<compile_context>
chip_gen: v7x
topology: tpu7x:2x2x1
jax: 0.10.0
libtpu: 0.0.40
codegen_flags: <defaults>
</compile_context>

<pallas_src>
import numpy as np
import jax
import jax.numpy as jnp
from jax.experimental import pallas as pl
from jax.experimental.pallas import tpu as pltpu

EPS = 1e-5
L_IN = 14                 # conv1(k=3): 14->12, pool: ->6, conv2(k=3): ->4, pool: ->2
C1, C2 = 64, 128
K = 3
T1 = L_IN - K + 1         # 12 conv1 output steps
P1 = T1 // 2              # 6 pooled steps after pool1
T2 = P1 - K + 1           # 4 conv2 output steps
P2 = T2 // 2              # 2 pooled steps after pool2
OUT_PAD = 8               # small zero-padded logits tail (real logits in [:, :2])
XCOLS = L_IN + 1          # input samples + constant-1 bias feature


# ---------------------------------------------------------------------------
# Kernels (built with the elementwise/epilogue dtype `ew` closed over).
# ---------------------------------------------------------------------------
def _build_folded_kernel(ew):
    """Fast path: BN scales folded into weights, BN shifts folded into next-layer bias."""
    def kernel(x_ref, w1_ref, w2_ref, b2_ref, wf1_ref, bf1_ref,
               wf2_ref, bf2_ref, wf3_ref, bf3_ref, o_ref):
        def mm(a, w_ref):     # bf16 MXU operands, f32 accumulation
            return jnp.dot(a.astype(w_ref.dtype), w_ref[...],
                           preferred_element_type=jnp.float32)
        r = lambda b_ref: b_ref[...].astype(ew)

        x = x_ref[...]                                               # (TB, 15) bf16, last col == 1
        # conv1 (+bias via ones column, *s1 folded into columns) -> ReLU
        h = jnp.maximum(mm(x, w1_ref).astype(ew), 0)                 # (TB, 768)
        # MaxPool1d(2): [even | odd] halves; BN1 shift pushed into conv2 bias
        hp = jnp.maximum(h[:, :P1 * C1], h[:, P1 * C1:])             # (TB, 384)
        # conv2 (+b2, +t1@W2, *s2 all pre-folded into w2/b2) -> ReLU
        g = jnp.maximum(mm(hp, w2_ref).astype(ew) + r(b2_ref), 0)    # (TB, 512)
        # MaxPool1d(2); BN2 shift pushed into fc1 bias
        f = jnp.maximum(g[:, :P2 * C2], g[:, P2 * C2:])              # (TB, 256)
        # MLP (dropouts are identity in inference mode)
        f = jnp.maximum(mm(f, wf1_ref).astype(ew) + r(bf1_ref), 0)   # (TB, 128)
        f = jnp.maximum(mm(f, wf2_ref).astype(ew) + r(bf2_ref), 0)   # (TB, 64)
        o_ref[...] = (mm(f, wf3_ref) + bf3_ref[...]).astype(o_ref.dtype)
    return kernel


def _build_general_kernel(ew):
    """Fallback when some folded BN scale <= 0: explicit per-channel scale/shift."""
    def kernel(x_ref, w1_ref, s1_ref, t1_ref, w2_ref, b2_ref, s2_ref, t2_ref,
               wf1_ref, bf1_ref, wf2_ref, bf2_ref, wf3_ref, bf3_ref, o_ref):
        def mm(a, w_ref):
            return jnp.dot(a.astype(w_ref.dtype), w_ref[...],
                           preferred_element_type=jnp.float32)
        r = lambda b_ref: b_ref[...].astype(ew)

        h = jnp.maximum(mm(x_ref[...], w1_ref).astype(ew), 0)        # conv1 + b1, ReLU
        h = h * r(s1_ref) + r(t1_ref)                                # BN1 (running stats)
        hp = jnp.maximum(h[:, :P1 * C1], h[:, P1 * C1:])             # pool1
        g = jnp.maximum(mm(hp, w2_ref).astype(ew) + r(b2_ref), 0)    # conv2 + b2, ReLU
        g = g * r(s2_ref) + r(t2_ref)                                # BN2
        f = jnp.maximum(g[:, :P2 * C2], g[:, P2 * C2:])              # pool2
        f = jnp.maximum(mm(f, wf1_ref).astype(ew) + r(bf1_ref), 0)
        f = jnp.maximum(mm(f, wf2_ref).astype(ew) + r(bf2_ref), 0)
        o_ref[...] = (mm(f, wf3_ref) + bf3_ref[...]).astype(o_ref.dtype)
    return kernel


# ---------------------------------------------------------------------------
# Parameter setup (deterministic, synthetic) and packing glue.
# ---------------------------------------------------------------------------
def init_params(key):
    ks = jax.random.split(key, 18)

    def u(k, shape, fan_in):
        bound = 1.0 / (fan_in ** 0.5)
        return jax.random.uniform(k, shape, jnp.float32, -bound, bound)

    p = {}
    # conv1 / bn1
    p["W1"] = u(ks[0], (C1, 1, K), 1 * K)
    p["b1"] = u(ks[1], (C1,), 1 * K)
    p["g1"] = jax.random.uniform(ks[2], (C1,), jnp.float32, 0.5, 1.5)
    p["be1"] = jax.random.uniform(ks[3], (C1,), jnp.float32, -0.1, 0.1)
    p["m1"] = jax.random.uniform(ks[4], (C1,), jnp.float32, -0.1, 0.1)
    p["v1"] = jax.random.uniform(ks[5], (C1,), jnp.float32, 0.5, 1.5)
    # conv2 / bn2
    p["W2"] = u(ks[6], (C2, C1, K), C1 * K)
    p["b2"] = u(ks[7], (C2,), C1 * K)
    p["g2"] = jax.random.uniform(ks[8], (C2,), jnp.float32, 0.5, 1.5)
    p["be2"] = jax.random.uniform(ks[9], (C2,), jnp.float32, -0.1, 0.1)
    p["m2"] = jax.random.uniform(ks[10], (C2,), jnp.float32, -0.1, 0.1)
    p["v2"] = jax.random.uniform(ks[11], (C2,), jnp.float32, 0.5, 1.5)
    # fc layers (PyTorch Linear layout: (out, in))
    p["Wfc1"] = u(ks[12], (128, C2 * 2), C2 * 2)
    p["bfc1"] = u(ks[13], (128,), C2 * 2)
    p["Wfc2"] = u(ks[14], (64, 128), 128)
    p["bfc2"] = u(ks[15], (64,), 128)
    p["Wfc3"] = u(ks[16], (2, 64), 64)
    p["bfc3"] = u(ks[17], (2,), 64)
    return p


def pack_params(p, matmul_dtype=jnp.bfloat16):
    """One-time host-side repack into lane-dense, MXU-friendly matrices.

    Returns (mode, arrays) where mode is "folded" (BN fully folded into the
    weights; valid when all folded BN scales are > 0) or "general".
    """
    W1 = np.asarray(p["W1"], np.float32)      # (64, 1, 3)
    W2 = np.asarray(p["W2"], np.float32)      # (128, 64, 3)
    b1 = np.asarray(p["b1"], np.float32)
    b2 = np.asarray(p["b2"], np.float32)

    # eval-mode BatchNorm -> per-channel scale s and shift t (applied after ReLU)
    s1 = np.asarray(p["g1"], np.float32) / np.sqrt(np.asarray(p["v1"], np.float32) + EPS)
    t1 = np.asarray(p["be1"], np.float32) - np.asarray(p["m1"], np.float32) * s1
    s2 = np.asarray(p["g2"], np.float32) / np.sqrt(np.asarray(p["v2"], np.float32) + EPS)
    t2 = np.asarray(p["be2"], np.float32) - np.asarray(p["m2"], np.float32) * s2

    # conv1 banded/Toeplitz matrix (15, 12*64); row 14 carries the conv bias (the
    # wrapper appends a constant-1 feature to x). Column blocks are ordered
    # [even times | odd times] so pool1 is max(first half, second half).
    perm1 = list(range(0, T1, 2)) + list(range(1, T1, 2))        # [0,2,..,10,1,3,..,11]
    w1t = np.zeros((XCOLS, T1 * C1), np.float32)
    for pidx, t in enumerate(perm1):
        for k in range(K):
            w1t[t + k, pidx * C1:(pidx + 1) * C1] = W1[:, 0, k]
        w1t[L_IN, pidx * C1:(pidx + 1) * C1] = b1

    # conv2 block-Toeplitz matrix (6*64, 4*128). Input rows: (pooled_time*64 + cin).
    # Output column blocks ordered [t0, t2 | t1, t3] so pool2 is max(halves) and the
    # pooled result comes out time-major automatically.
    perm2 = list(range(0, T2, 2)) + list(range(1, T2, 2))        # [0, 2, 1, 3]
    w2t = np.zeros((P1 * C1, T2 * C2), np.float32)
    for q, u in enumerate(perm2):
        for k in range(K):
            w2t[(u + k) * C1:(u + k + 1) * C1, q * C2:(q + 1) * C2] = W2[:, :, k].T
    b2t = np.tile(b2, T2)                                        # (512,), per-channel per block

    # fc1: permute columns from torch's channel-major flatten (c*2 + t) to the
    # kernel's time-major flatten (t*128 + c)
    Wfc1 = np.asarray(p["Wfc1"], np.float32)                     # (128, 256)
    wf1 = np.transpose(Wfc1.reshape(128, C2, P2), (2, 1, 0)).reshape(C2 * P2, 128)
    bf1 = np.asarray(p["bfc1"], np.float32)
    wf2 = np.asarray(p["Wfc2"], np.float32).T                    # (128, 64)
    bf2 = np.asarray(p["bfc2"], np.float32)

    # fc3 padded to OUT_PAD output lanes (real logits live in columns [:2])
    wf3 = np.zeros((64, OUT_PAD), np.float32)
    wf3[:, :2] = np.asarray(p["Wfc3"], np.float32).T
    bf3 = np.zeros((OUT_PAD,), np.float32)
    bf3[:2] = np.asarray(p["bfc3"], np.float32)

    row = lambda v: jnp.asarray(np.asarray(v, np.float32).reshape(1, -1))
    wm = lambda w: jnp.asarray(w, dtype=matmul_dtype)            # MXU operands -> bf16

    if bool(np.all(s1 > 0.0) and np.all(s2 > 0.0)):
        # ReLU commutes with a positive per-channel scale, so fold s into the matmul
        # columns; push the post-ReLU BN shifts through the max-pools into the next
        # layer's bias -> the in-kernel VPU epilogue shrinks to ReLU/max only.
        w1f = w1t * np.tile(s1, T1)[None, :]
        t1_pool = np.tile(t1, P1)                                # shift on pooled conv1 features
        s2_cols = np.tile(s2, T2)
        w2f = w2t * s2_cols[None, :]
        b2f = (b2t + t1_pool @ w2t) * s2_cols
        t2_pool = np.tile(t2, P2)                                # shift on pooled conv2 features
        bf1f = bf1 + t2_pool @ wf1
        arrays = (wm(w1f), wm(w2f), row(b2f), wm(wf1), row(bf1f),
                  wm(wf2), row(bf2), wm(wf3), row(bf3))
        return "folded", arrays

    # Fallback: some gamma <= 0 -> keep BN scale/shift explicit in the kernel.
    arrays = (wm(w1t), row(np.tile(s1, T1)), row(np.tile(t1, T1)),
              wm(w2t), row(b2t), row(np.tile(s2, T2)), row(np.tile(t2, T2)),
              wm(wf1), row(bf1), wm(wf2), row(bf2), wm(wf3), row(bf3))
    return "general", arrays


# ---------------------------------------------------------------------------
# Wrapper: generation-aware tiling + pallas_call.
# ---------------------------------------------------------------------------
def _round_up(x, m):
    return ((x + m - 1) // m) * m


def _tile_config():
    """Per-generation batch tile / VMEM limit / elementwise dtype choices."""
    try:
        kind = jax.devices()[0].device_kind.lower()
    except Exception:
        kind = ""
    if "v7" in kind:
        # 64 MiB VMEM and 2 TensorCores: smaller tile, keep >= 2 grid steps, bf16 VALU.
        return dict(block_b=1024, vmem_limit=48 << 20, n_split=2, ew=jnp.bfloat16)
    if "v6" in kind:
        return dict(block_b=2048, vmem_limit=80 << 20, n_split=1, ew=jnp.bfloat16)
    if "v5" in kind:
        # v5e has no bf16 VALU -> keep the elementwise epilogue in f32.
        return dict(block_b=2048, vmem_limit=80 << 20, n_split=1, ew=jnp.float32)
    # Unknown / older parts: conservative defaults.
    return dict(block_b=512, vmem_limit=None, n_split=1, ew=jnp.float32)


def stress_cnn_forward(x_ncl, arrays, *, mode="folded", block_b=None):
    """x_ncl: (B, 1, 14) float32, same layout as the PyTorch module's input."""
    B = x_ncl.shape[0]
    cfg = _tile_config()
    if block_b is None:
        block_b = cfg["block_b"]

    # bf16 input (halves input DMA) + constant-1 feature column carrying conv1's bias.
    x2d = x_ncl[:, 0, :].astype(jnp.bfloat16)
    x_aug = jnp.concatenate([x2d, jnp.ones((B, 1), jnp.bfloat16)], axis=1)   # (B, 15)

    tb = min(block_b, _round_up(max(B, 1), 8))
    if cfg["n_split"] > 1:
        # keep at least n_split grid steps so the "parallel" axis shards across TCs
        tb = min(tb, _round_up(-(-max(B, 1) // cfg["n_split"]), 8))
    bp = _round_up(B, tb)
    if bp != B:
        x_aug = jnp.pad(x_aug, ((0, bp - B), (0, 0)))

    kernel = (_build_folded_kernel if mode == "folded" else _build_general_kernel)(cfg["ew"])

    in_specs = [pl.BlockSpec((tb, XCOLS), lambda i: (i, 0))]
    # Weights/biases: full-array blocks with a constant index_map -> DMA'd once and
    # kept resident across the batch grid.
    # TODO(synk): pipeline_mode=pl.Buffered(1) on these constant specs would free
    # ~0.5 MiB of double-buffer VMEM; left on the default path for robustness.
    in_specs += [pl.BlockSpec(a.shape, lambda i: (0, 0)) for a in arrays]

    flops_per_sample = 2 * (XCOLS * T1 * C1 + P1 * C1 * T2 * C2
                            + P2 * C2 * 128 + 128 * 64 + 64 * OUT_PAD)
    weight_bytes = sum(int(np.prod(a.shape)) * a.dtype.itemsize for a in arrays)
    cost = pl.CostEstimate(
        flops=bp * flops_per_sample,
        transcendentals=0,
        bytes_accessed=bp * (XCOLS * 2 + OUT_PAD * 4) + weight_bytes,
    )

    cp = dict(dimension_semantics=("parallel",))
    if cfg["vmem_limit"] is not None:
        cp["vmem_limit_bytes"] = cfg["vmem_limit"]

    out = pl.pallas_call(
        kernel,
        out_shape=jax.ShapeDtypeStruct((bp, OUT_PAD), jnp.float32),
        grid=(bp // tb,),
        in_specs=in_specs,
        out_specs=pl.BlockSpec((tb, OUT_PAD), lambda i: (i, 0)),
        compiler_params=pltpu.CompilerParams(**cp),
        cost_estimate=cost,
    )(x_aug, *arrays)
    return out[:B, :2]


# ---------------------------------------------------------------------------
# Pure-JAX reference that mirrors PyTorch eval-mode semantics (NCL layout).
# ---------------------------------------------------------------------------
def reference_forward(x_ncl, p):
    def bn(y, g, be, m, v):
        return (y - m[None, :, None]) / jnp.sqrt(v[None, :, None] + EPS) \
               * g[None, :, None] + be[None, :, None]

    dn = ("NCH", "OIH", "NCH")
    y = jax.lax.conv_general_dilated(x_ncl, p["W1"], (1,), "VALID", dimension_numbers=dn)
    y = y + p["b1"][None, :, None]
    y = jnp.maximum(y, 0.0)
    y = bn(y, p["g1"], p["be1"], p["m1"], p["v1"])
    B, C, L = y.shape
    y = y.reshape(B, C, L // 2, 2).max(axis=-1)
    y = jax.lax.conv_general_dilated(y, p["W2"], (1,), "VALID", dimension_numbers=dn)
    y = y + p["b2"][None, :, None]
    y = jnp.maximum(y, 0.0)
    y = bn(y, p["g2"], p["be2"], p["m2"], p["v2"])
    B, C, L = y.shape
    y = y.reshape(B, C, L // 2, 2).max(axis=-1)
    f = y.reshape(B, -1)                                         # channel-major, like .view
    f = jnp.maximum(f @ p["Wfc1"].T + p["bfc1"], 0.0)
    f = jnp.maximum(f @ p["Wfc2"].T + p["bfc2"], 0.0)
    return f @ p["Wfc3"].T + p["bfc3"]


if __name__ == "__main__":
    key = jax.random.PRNGKey(0)
    kx, kp = jax.random.split(key)
    B = 2
    # PyTorch-style input: (batch, in_channels=1, length=14)
    x = jax.random.normal(kx, (B, 1, L_IN), jnp.float32)
    params = init_params(kp)

    # TODO(synk): Dropout / BatchNorm use eval (inference) semantics (dropout =
    # identity, BN = folded running stats), matching the real-time prediction use.
    fwd = jax.jit(stress_cnn_forward, static_argnames=("mode", "block_b"))

    # Fast path: BN folded into the Toeplitz/fc weights (all folded scales > 0 here).
    mode, arrays = pack_params(params)
    out = jax.block_until_ready(fwd(x, arrays, mode=mode))
    ref = reference_forward(x, params)
    assert out.shape == (B, 2)
    # Tolerance accounts for bf16 matmul operands (+ bf16 epilogue on v6e/v7x) vs f32 ref.
    assert bool(jnp.allclose(out, ref, rtol=5e-2, atol=5e-2)), (out, ref)

    # Fallback path: flip one BN gamma negative so the scale-through-ReLU fold is invalid.
    params_neg = dict(params)
    params_neg["g1"] = params["g1"].at[0].set(-params["g1"][0])
    mode_n, arrays_n = pack_params(params_neg)
    assert mode_n == "general"
    out_n = jax.block_until_ready(fwd(x, arrays_n, mode=mode_n))
    ref_n = reference_forward(x, params_neg)
    assert bool(jnp.allclose(out_n, ref_n, rtol=5e-2, atol=5e-2)), (out_n, ref_n)

    print("KERNEL_OK")
</pallas_src>

<mosaic_0001>
module attributes {stable_mosaic.version = 11 : i64} {
  func.func @kernel(%arg0: i32, %arg1: memref<8x15xbf16, #tpu.memory_space<vmem>>, %arg2: memref<15x768xbf16, #tpu.memory_space<vmem>>, %arg3: memref<384x512xbf16, #tpu.memory_space<vmem>>, %arg4: memref<1x512xf32, #tpu.memory_space<vmem>>, %arg5: memref<256x128xbf16, #tpu.memory_space<vmem>>, %arg6: memref<1x128xf32, #tpu.memory_space<vmem>>, %arg7: memref<128x64xbf16, #tpu.memory_space<vmem>>, %arg8: memref<1x64xf32, #tpu.memory_space<vmem>>, %arg9: memref<64x8xbf16, #tpu.memory_space<vmem>>, %arg10: memref<1x8xf32, #tpu.memory_space<vmem>>, %arg11: memref<8x8xf32, #tpu.memory_space<vmem>>) attributes {dimension_semantics = [#tpu.dimension_semantics<parallel>], iteration_bounds = array<i64: 1>, scalar_prefetch = 0 : i64, scratch_operands = 0 : i64, tpu.core_type = #tpu.core_type<tc>, window_params = [{transform_indices = @transform_0, window_bounds = array<i64: 8, 15>}, {pipeline_mode = #tpu.pipeline_mode<synchronous>, transform_indices = @transform_1, window_bounds = array<i64: 15, 768>}, {pipeline_mode = #tpu.pipeline_mode<synchronous>, transform_indices = @transform_2, window_bounds = array<i64: 384, 512>}, {pipeline_mode = #tpu.pipeline_mode<synchronous>, transform_indices = @transform_3, window_bounds = array<i64: 1, 512>}, {pipeline_mode = #tpu.pipeline_mode<synchronous>, transform_indices = @transform_4, window_bounds = array<i64: 256, 128>}, {pipeline_mode = #tpu.pipeline_mode<synchronous>, transform_indices = @transform_5, window_bounds = array<i64: 1, 128>}, {pipeline_mode = #tpu.pipeline_mode<synchronous>, transform_indices = @transform_6, window_bounds = array<i64: 128, 64>}, {pipeline_mode = #tpu.pipeline_mode<synchronous>, transform_indices = @transform_7, window_bounds = array<i64: 1, 64>}, {pipeline_mode = #tpu.pipeline_mode<synchronous>, transform_indices = @transform_8, window_bounds = array<i64: 64, 8>}, {pipeline_mode = #tpu.pipeline_mode<synchronous>, transform_indices = @transform_9, window_bounds = array<i64: 1, 8>}, {transform_indices = @transform_10, window_bounds = array<i64: 8, 8>}]} {
    %c0 = arith.constant 0 : index
    %c0_0 = arith.constant 0 : index
    %0 = vector.load %arg1[%c0, %c0_0] : memref<8x15xbf16, #tpu.memory_space<vmem>>, vector<8x15xbf16>
    %c0_1 = arith.constant 0 : index
    %c0_2 = arith.constant 0 : index
    %1 = vector.load %arg2[%c0_1, %c0_2] : memref<15x768xbf16, #tpu.memory_space<vmem>>, vector<15x768xbf16>
    %cst = arith.constant dense<0.000000e+00> : vector<8x768xf32>
    %2 = tpu.matmul %0, %1, %cst {dimension_numbers = #tpu.dot_dimension_numbers<[1], [0], [0], [1], [0, 0, 1, 1], [], []>} : vector<8x15xbf16>, vector<15x768xbf16>, vector<8x768xf32> -> vector<8x768xf32>
    %cst_3 = arith.constant 0.000000e+00 : f32
    %3 = vector.broadcast %cst_3 : f32 to vector<8x768xf32>
    %4 = arith.maximumf %2, %3 : vector<8x768xf32>
    %5 = vector.extract_strided_slice %4 {offsets = [0, 0], sizes = [8, 384], strides = [1, 1]} : vector<8x768xf32> to vector<8x384xf32>
    %6 = vector.extract_strided_slice %4 {offsets = [0, 384], sizes = [8, 384], strides = [1, 1]} : vector<8x768xf32> to vector<8x384xf32>
    %7 = arith.maximumf %5, %6 : vector<8x384xf32>
    %8 = arith.truncf %7 : vector<8x384xf32> to vector<8x384xbf16>
    %c0_4 = arith.constant 0 : index
    %c0_5 = arith.constant 0 : index
    %9 = vector.load %arg3[%c0_4, %c0_5] : memref<384x512xbf16, #tpu.memory_space<vmem>>, vector<384x512xbf16>
    %cst_6 = arith.constant dense<0.000000e+00> : vector<8x512xf32>
    %10 = tpu.matmul %8, %9, %cst_6 {dimension_numbers = #tpu.dot_dimension_numbers<[1], [0], [0], [1], [0, 0, 1, 1], [], []>} : vector<8x384xbf16>, vector<384x512xbf16>, vector<8x512xf32> -> vector<8x512xf32>
    %c0_7 = arith.constant 0 : index
    %c0_8 = arith.constant 0 : index
    %11 = vector.load %arg4[%c0_7, %c0_8] : memref<1x512xf32, #tpu.memory_space<vmem>>, vector<1x512xf32>
    %12 = vector.broadcast %11 : vector<1x512xf32> to vector<8x512xf32>
    %13 = arith.addf %10, %12 : vector<8x512xf32>
    %cst_9 = arith.constant 0.000000e+00 : f32
    %14 = vector.broadcast %cst_9 : f32 to vector<8x512xf32>
    %15 = arith.maximumf %13, %14 : vector<8x512xf32>
    %16 = vector.extract_strided_slice %15 {offsets = [0, 0], sizes = [8, 256], strides = [1, 1]} : vector<8x512xf32> to vector<8x256xf32>
    %17 = vector.extract_strided_slice %15 {offsets = [0, 256], sizes = [8, 256], strides = [1, 1]} : vector<8x512xf32> to vector<8x256xf32>
    %18 = arith.maximumf %16, %17 : vector<8x256xf32>
    %19 = arith.truncf %18 : vector<8x256xf32> to vector<8x256xbf16>
    %c0_10 = arith.constant 0 : index
    %c0_11 = arith.constant 0 : index
    %20 = vector.load %arg5[%c0_10, %c0_11] : memref<256x128xbf16, #tpu.memory_space<vmem>>, vector<256x128xbf16>
    %cst_12 = arith.constant dense<0.000000e+00> : vector<8x128xf32>
    %21 = tpu.matmul %19, %20, %cst_12 {dimension_numbers = #tpu.dot_dimension_numbers<[1], [0], [0], [1], [0, 0, 1, 1], [], []>} : vector<8x256xbf16>, vector<256x128xbf16>, vector<8x128xf32> -> vector<8x128xf32>
    %c0_13 = arith.constant 0 : index
    %c0_14 = arith.constant 0 : index
    %22 = vector.load %arg6[%c0_13, %c0_14] : memref<1x128xf32, #tpu.memory_space<vmem>>, vector<1x128xf32>
    %23 = vector.broadcast %22 : vector<1x128xf32> to vector<8x128xf32>
    %24 = arith.addf %21, %23 : vector<8x128xf32>
    %cst_15 = arith.constant 0.000000e+00 : f32
    %25 = vector.broadcast %cst_15 : f32 to vector<8x128xf32>
    %26 = arith.maximumf %24, %25 : vector<8x128xf32>
    %27 = arith.truncf %26 : vector<8x128xf32> to vector<8x128xbf16>
    %c0_16 = arith.constant 0 : index
    %c0_17 = arith.constant 0 : index
    %28 = vector.load %arg7[%c0_16, %c0_17] : memref<128x64xbf16, #tpu.memory_space<vmem>>, vector<128x64xbf16>
    %cst_18 = arith.constant dense<0.000000e+00> : vector<8x64xf32>
    %29 = tpu.matmul %27, %28, %cst_18 {dimension_numbers = #tpu.dot_dimension_numbers<[1], [0], [0], [1], [0, 0, 1, 1], [], []>} : vector<8x128xbf16>, vector<128x64xbf16>, vector<8x64xf32> -> vector<8x64xf32>
    %c0_19 = arith.constant 0 : index
    %c0_20 = arith.constant 0 : index
    %30 = vector.load %arg8[%c0_19, %c0_20] : memref<1x64xf32, #tpu.memory_space<vmem>>, vector<1x64xf32>
    %31 = vector.broadcast %30 : vector<1x64xf32> to vector<8x64xf32>
    %32 = arith.addf %29, %31 : vector<8x64xf32>
    %cst_21 = arith.constant 0.000000e+00 : f32
    %33 = vector.broadcast %cst_21 : f32 to vector<8x64xf32>
    %34 = arith.maximumf %32, %33 : vector<8x64xf32>
    %35 = arith.truncf %34 : vector<8x64xf32> to vector<8x64xbf16>
    %c0_22 = arith.constant 0 : index
    %c0_23 = arith.constant 0 : index
    %36 = vector.load %arg9[%c0_22, %c0_23] : memref<64x8xbf16, #tpu.memory_space<vmem>>, vector<64x8xbf16>
    %cst_24 = arith.constant dense<0.000000e+00> : vector<8x8xf32>
    %37 = tpu.matmul %35, %36, %cst_24 {dimension_numbers = #tpu.dot_dimension_numbers<[1], [0], [0], [1], [0, 0, 1, 1], [], []>} : vector<8x64xbf16>, vector<64x8xbf16>, vector<8x8xf32> -> vector<8x8xf32>
    %c0_25 = arith.constant 0 : index
    %c0_26 = arith.constant 0 : index
    %38 = vector.load %arg10[%c0_25, %c0_26] : memref<1x8xf32, #tpu.memory_space<vmem>>, vector<1x8xf32>
    %39 = vector.broadcast %38 : vector<1x8xf32> to vector<8x8xf32>
    %40 = arith.addf %37, %39 : vector<8x8xf32>
    %c0_27 = arith.constant 0 : index
    %c0_28 = arith.constant 0 : index
    %41 = vector.load %arg11[%c0_27, %c0_28] : memref<8x8xf32, #tpu.memory_space<vmem>>, vector<8x8xf32>
    tpu.vector_store %arg11[%c0_27, %c0_28], %40 {strides = array<i32>} : memref<8x8xf32, #tpu.memory_space<vmem>>, vector<8x8xf32>,
    return
  }
  func.func @transform_0(%arg0: i32) -> (i32, i32) {
    %c0_i32 = arith.constant 0 : i32
    %c0_i32_0 = arith.constant 0 : i32
    return %arg0, %c0_i32 : i32, i32
  }
  func.func @transform_1(%arg0: i32) -> (i32, i32) {
    %c0_i32 = arith.constant 0 : i32
    %c0_i32_0 = arith.constant 0 : i32
    %c0_i32_1 = arith.constant 0 : i32
    return %c0_i32, %c0_i32_0 : i32, i32
  }
  func.func @transform_2(%arg0: i32) -> (i32, i32) {
    %c0_i32 = arith.constant 0 : i32
    %c0_i32_0 = arith.constant 0 : i32
    %c0_i32_1 = arith.constant 0 : i32
    return %c0_i32, %c0_i32_0 : i32, i32
  }
  func.func @transform_3(%arg0: i32) -> (i32, i32) {
    %c0_i32 = arith.constant 0 : i32
    %c0_i32_0 = arith.constant 0 : i32
    %c0_i32_1 = arith.constant 0 : i32
    return %c0_i32, %c0_i32_0 : i32, i32
  }
  func.func @transform_4(%arg0: i32) -> (i32, i32) {
    %c0_i32 = arith.constant 0 : i32
    %c0_i32_0 = arith.constant 0 : i32
    %c0_i32_1 = arith.constant 0 : i32
    return %c0_i32, %c0_i32_0 : i32, i32
  }
  func.func @transform_5(%arg0: i32) -> (i32, i32) {
    %c0_i32 = arith.constant 0 : i32
    %c0_i32_0 = arith.constant 0 : i32
    %c0_i32_1 = arith.constant 0 : i32
    return %c0_i32, %c0_i32_0 : i32, i32
  }
  func.func @transform_6(%arg0: i32) -> (i32, i32) {
    %c0_i32 = arith.constant 0 : i32
    %c0_i32_0 = arith.constant 0 : i32
    %c0_i32_1 = arith.constant 0 : i32
    return %c0_i32, %c0_i32_0 : i32, i32
  }
  func.func @transform_7(%arg0: i32) -> (i32, i32) {
    %c0_i32 = arith.constant 0 : i32
    %c0_i32_0 = arith.constant 0 : i32
    %c0_i32_1 = arith.constant 0 : i32
    return %c0_i32, %c0_i32_0 : i32, i32
  }
  func.func @transform_8(%arg0: i32) -> (i32, i32) {
    %c0_i32 = arith.constant 0 : i32
    %c0_i32_0 = arith.constant 0 : i32
    %c0_i32_1 = arith.constant 0 : i32
    return %c0_i32, %c0_i32_0 : i32, i32
  }
  func.func @transform_9(%arg0: i32) -> (i32, i32) {
    %c0_i32 = arith.constant 0 : i32
    %c0_i32_0 = arith.constant 0 : i32
    %c0_i32_1 = arith.constant 0 : i32
    return %c0_i32, %c0_i32_0 : i32, i32
  }
  func.func @transform_10(%arg0: i32) -> (i32, i32) {
    %c0_i32 = arith.constant 0 : i32
    %c0_i32_0 = arith.constant 0 : i32
    return %arg0, %c0_i32 : i32, i32
  }
}

</mosaic_0001>

<llo_original>
// kernel: stress_cnn_forward.1
$region0: #{stress_cnn_forward.1}
  #allocation0 [shape = 'u32[]', space=smem, size = 0x4, offset = 0x4, fixed_abs, tag = 'smem constant byte address 0x4 - core index']
  #allocation1 [shape = 'u32[144,128]{1,0:T(1,128)}', space=vmem, size = 0x12000, scoped, tag = 'internal scratch']
  %s0 = inlined_call_operand.vmem [shape: bf16[8,15], index: 0, kind: input, shape index: {}]
  %s1 = inlined_call_operand.hbm [shape: bf16[15,768], index: 1, kind: input, shape index: {}]
  %s2 = inlined_call_operand.hbm [shape: bf16[384,512], index: 2, kind: input, shape index: {}]
  %s3 = inlined_call_operand.hbm [shape: f32[1,512], index: 3, kind: input, shape index: {}]
  %s4 = inlined_call_operand.vmem [shape: bf16[256,128], index: 4, kind: input, shape index: {}]
  %s5 = inlined_call_operand.vmem [shape: f32[1,128], index: 5, kind: input, shape index: {}]
  %s6 = inlined_call_operand.vmem [shape: bf16[128,64], index: 6, kind: input, shape index: {}]
  %s7 = inlined_call_operand.vmem [shape: f32[1,64], index: 7, kind: input, shape index: {}]
  %s8 = inlined_call_operand.vmem [shape: bf16[64,8], index: 8, kind: input, shape index: {}]
  %s9 = inlined_call_operand.vmem [shape: f32[1,8], index: 9, kind: input, shape index: {}]
  %s10 = inlined_call_operand.vmem [shape: f32[8,8], index: 10, kind: output, shape index: {}]
  %s11 = sld [smem:[#allocation0]]
  $region62: #{stress_cnn_forward.1} parent=0
    _
  %s13 = ssub.s32 1, %s11
  %s14 = scalar_select 0, %s13, %s11
  $region1: #{stress_cnn_forward.1} parent=0
    #allocation2 [shape = 'u8[24576]{0}', space=vmem, size = 0x6000, scoped, tag = 'input window, operand 1, single buffered']
    #allocation3 [shape = 's32[1]{0}', space=sflag, size = 0x4, scoped, tag = 'scoped memory for stress_cnn_forward.1']
    #allocation4 [shape = 'u8[393216]{0}', space=vmem, size = 0x60000, scoped, tag = 'input window, operand 2, single buffered']
    #allocation5 [shape = 's32[1]{0}', space=sflag, size = 0x4, scoped, tag = 'scoped memory for stress_cnn_forward.1']
    #allocation6 [shape = 'u8[2048]{0}', space=vmem, size = 0x800, scoped, tag = 'input window, operand 3, single buffered']
    %15 = vsyncpa [#allocation3], 0
    %16 = vsyncpa [#allocation5], 0
    // Predicated region
    $region2: #{stress_cnn_forward.1} parent=1 // pred_check
      _
    $region3: #{stress_cnn_forward.1} parent=1 // pred_check_branch
      %18 = sbr.rel (0) target = $region5
    $region4: #{stress_cnn_forward.1} parent=1 // pred_region
      _
    $region5: #{stress_cnn_forward.1} parent=1 // pred_fallthru
      _
    // Predicated region
    $region6: #{stress_cnn_forward.1} parent=1 // pred_check
      _
    $region7: #{stress_cnn_forward.1} parent=1 // pred_check_branch
      %20 = sbr.rel (0) target = $region9
    $region8: #{stress_cnn_forward.1} parent=1 // pred_region
      %s22 = ssub.s32 768, 768
      %23 = vsyncadd [#allocation3], %s22
      %s24 = sshll.u32 [#allocation2], 4
      %s25 = int_to_ptr.vmem [resolvable:$true] %s24
      %30 = dma.hbm_to_vmem [thread:$0]  %s1, 768, %s25, [#allocation3], 384, 384, 24
    $region9: #{stress_cnn_forward.1} parent=1 // pred_fallthru
      _
    // Predicated region
    $region10: #{stress_cnn_forward.1} parent=1 // pred_check
      _
    $region11: #{stress_cnn_forward.1} parent=1 // pred_check_branch
      %32 = sbr.rel (0) target = $region13
    $region12: #{stress_cnn_forward.1} parent=1 // pred_region
      %s34 = ssub.s32 12288, 12288
      %35 = vsyncadd [#allocation5], %s34
      %s36 = sshll.u32 [#allocation4], 4
      %s37 = int_to_ptr.vmem [resolvable:$true] %s36
      %42 = dma.hbm_to_vmem [thread:$0]  %s2, 12288, %s37, [#allocation5], 256, 256, 16
    $region13: #{stress_cnn_forward.1} parent=1 // pred_fallthru
      _
    // Predicated region
    $region14: #{stress_cnn_forward.1} parent=1 // pred_check
      _
    $region15: #{stress_cnn_forward.1} parent=1 // pred_check_branch
      %44 = sbr.rel (0) target = $region17
    $region16: #{stress_cnn_forward.1} parent=1 // pred_region
      %s46 = ssub.s32 64, 64
      %47 = vsyncadd [#allocation5], %s46
      %s49 = sshll.u32 [#allocation6], 4
      %s50 = int_to_ptr.vmem [resolvable:$true] %s49
      %52 = dma.hbm_to_vmem [thread:$0]  %s3, 64, %s50, [#allocation5]
    $region17: #{stress_cnn_forward.1} parent=1 // pred_fallthru
      _
    // Predicated region
    $region18: #{stress_cnn_forward.1} parent=1 // pred_check
      _
    $region19: #{stress_cnn_forward.1} parent=1 // pred_check_branch
      %54 = sbr.rel (0) target = $region21
    $region20: #{stress_cnn_forward.1} parent=1 // pred_region
      _
    $region21: #{stress_cnn_forward.1} parent=1 // pred_fallthru
      _
    // Predicated region
    $region22: #{stress_cnn_forward.1} parent=1 // pred_check
      _
    $region23: #{stress_cnn_forward.1} parent=1 // pred_check_branch
      %56 = sbr.rel (0) target = $region25
    $region24: #{stress_cnn_forward.1} parent=1 // pred_region
      _
    $region25: #{stress_cnn_forward.1} parent=1 // pred_fallthru
      _
    // Predicated region
    $region26: #{stress_cnn_forward.1} parent=1 // pred_check
      _
    $region27: #{stress_cnn_forward.1} parent=1 // pred_check_branch
      %58 = sbr.rel (0) target = $region29
    $region28: #{stress_cnn_forward.1} parent=1 // pred_region
      _
    $region29: #{stress_cnn_forward.1} parent=1 // pred_fallthru
      _
    // Predicated region
    $region30: #{stress_cnn_forward.1} parent=1 // pred_check
      _
    $region31: #{stress_cnn_forward.1} parent=1 // pred_check_branch
      %60 = sbr.rel (0) target = $region33
    $region32: #{stress_cnn_forward.1} parent=1 // pred_region
      _
    $region33: #{stress_cnn_forward.1} parent=1 // pred_fallthru
      _
    // Predicated region
    $region34: #{stress_cnn_forward.1} parent=1 // pred_check
      _
    $region35: #{stress_cnn_forward.1} parent=1 // pred_check_branch
      %62 = sbr.rel (0) target = $region37
    $region36: #{stress_cnn_forward.1} parent=1 // pred_region
      _
    $region37: #{stress_cnn_forward.1} parent=1 // pred_fallthru
      _
    // Predicated region
    $region38: #{stress_cnn_forward.1} parent=1 // pred_check
      _
    $region39: #{stress_cnn_forward.1} parent=1 // pred_check_branch
      %64 = sbr.rel (0) target = $region41
    $region40: #{stress_cnn_forward.1} parent=1 // pred_region
      _
    $region41: #{stress_cnn_forward.1} parent=1 // pred_fallthru
      _
    // Predicated region
    $region42: #{stress_cnn_forward.1} parent=1 // pred_check
      _
    $region43: #{stress_cnn_forward.1} parent=1 // pred_check_branch
      %66 = sbr.rel (0) target = $region45
    $region44: #{stress_cnn_forward.1} parent=1 // pred_region
      %67 = dma.done [#allocation3], 768
    $region45: #{stress_cnn_forward.1} parent=1 // pred_fallthru
      _
    // Predicated region
    $region46: #{stress_cnn_forward.1} parent=1 // pred_check
      _
    $region47: #{stress_cnn_forward.1} parent=1 // pred_check_branch
      %69 = sbr.rel (0) target = $region49
    $region48: #{stress_cnn_forward.1} parent=1 // pred_region
      %70 = dma.done [#allocation5], 12288
    $region49: #{stress_cnn_forward.1} parent=1 // pred_fallthru
      _
    // Predicated region
    $region50: #{stress_cnn_forward.1} parent=1 // pred_check
      _
    $region51: #{stress_cnn_forward.1} parent=1 // pred_check_branch
      %72 = sbr.rel (0) target = $region53
    $region52: #{stress_cnn_forward.1} parent=1 // pred_region
      %73 = dma.done [#allocation5], 64
    $region53: #{stress_cnn_forward.1} parent=1 // pred_fallthru
      _
    %v75 = vld [vmem:[%s0] sm:$0xf]
    %v76 = vld [vmem:[#allocation2] sm:$0xff]
    %v77 = vld [vmem:[#allocation2 + $0x8] sm:$0xff]
    %v78 = vld [vmem:[#allocation2 + $0x10] sm:$0xff]
    %v79 = vld [vmem:[#allocation2 + $0x18] sm:$0xff]
    %v80 = vld [vmem:[#allocation2 + $0x20] sm:$0xff]
    %v81 = vld [vmem:[#allocation2 + $0x28] sm:$0xff]
    %v88 = vunpack.c.l.b16 %v76
    %v89 = vunpack.c.h.b16 %v76
    %v90 = vunpack.c.l.b16 %v77
    %v91 = vunpack.c.h.b16 %v77
    %v92 = vunpack.c.l.b16 %v78
    %v93 = vunpack.c.h.b16 %v78
    %v94 = vunpack.c.l.b16 %v79
    %v95 = vunpack.c.h.b16 %v79
    %v96 = vunpack.c.l.b16 %v80
    %v97 = vunpack.c.h.b16 %v80
    %v98 = vunpack.c.l.b16 %v81
    %v99 = vunpack.c.h.b16 %v81
    %v100 = vpack.c.b16 %v94, %v88
    %v101 = vpack.c.b16 %v95, %v89
    %v102 = vpack.c.b16 %v96, %v90
    %v103 = vpack.c.b16 %v97, %v91
    %v104 = vpack.c.b16 %v98, %v92
    %v105 = vpack.c.b16 %v99, %v93
    %vm106 = vcmask 121856
    %v108 = vsel %vm106, %v75, 0
    %vm110 = vcmask 1046528
    %vm111 = vcmask 1047552
    %v112 = vsel %vm110, 4294967295, 65535
    %v113 = vsel %vm111, %v112, 0
    %v115 = vand.u32 %v100, %v113
    %v118 = vand.u32 %v101, %v113
    %v121 = vand.u32 %v102, %v113
    %v124 = vand.u32 %v103, %v113
    %v127 = vand.u32 %v104, %v113
    %v130 = vand.u32 %v105, %v113
    %132 = vmatprep.subr.bf16.mxu0 %v118
    %133 = vmatpush1.bf16.msra.mxu0 %v115
    %134 = vmatprep.subr.bf16.mxu0 0
    %135 = vmatpush1.bf16.msra.mxu0 0
    %136 = vmatprep.subr.bf16.mxu0 0
    %137 = vmatpush1.bf16.msra.mxu0 0
    %138 = vmatprep.subr.bf16.mxu0 0
    %139 = vmatpush1.bf16.msra.mxu0 0
    %140 = vmatprep.subr.bf16.mxu0 0
    %141 = vmatpush1.bf16.msra.mxu0 0
    %142 = vmatprep.subr.bf16.mxu0 0
    %143 = vmatpush1.bf16.msra.mxu0 0
    %144 = vmatprep.subr.bf16.mxu0 0
    %145 = vmatpush1.bf16.msra.mxu0 0
    %146 = vmatprep.subr.bf16.mxu0 0
    %147 = vmatpush1.bf16.msra.mxu0 0
    %148 = vmatprep.subr.bf16.mxu0 0
    %149 = vmatpush1.bf16.msra.mxu0 0
    %150 = vmatprep.subr.bf16.mxu0 0
    %151 = vmatpush1.bf16.msra.mxu0 0
    %152 = vmatprep.subr.bf16.mxu0 0
    %153 = vmatpush1.bf16.msra.mxu0 0
    %154 = vmatprep.subr.bf16.mxu0 0
    %155 = vmatpush1.bf16.msra.mxu0 0
    %156 = vmatprep.subr.bf16.mxu0 0
    %157 = vmatpush1.bf16.msra.mxu0 0
    %158 = vmatprep.subr.bf16.mxu0 0
    %159 = vmatpush1.bf16.msra.mxu0 0
    %160 = vmatprep.subr.bf16.mxu0 0
    %161 = vmatpush1.bf16.msra.mxu0 0
    %162 = vmatprep.subr.bf16.mxu0 0
    %163 = vmatpush1.bf16.msra.mxu0 0
    %164 = vmatprep.mubr.bf16.mxu0 0
    %165 = vmatmul.mubr.bf16.gmra.mrb[0].mxu0 %v108
    %v166 = vpop.f32.mrb[0].mxu0
    %v167 = vadd.f32 0.0, %v166
    %v168 = vpop.f32.mrb[0].mxu0
    %v169 = vadd.f32 0.0, %v168
    %v170 = vpop.f32.mrb[0].mxu0
    %v171 = vpop.f32.mrb[0].mxu0
    %172 = vdwg.mxu0
    %173 = vmatprep.subr.bf16.mxu0 %v124
    %174 = vmatpush1.bf16.msra.mxu0 %v121
    %175 = vmatprep.subr.bf16.mxu0 0
    %176 = vmatpush1.bf16.msra.mxu0 0
    %177 = vmatprep.subr.bf16.mxu0 0
    %178 = vmatpush1.bf16.msra.mxu0 0
    %179 = vmatprep.subr.bf16.mxu0 0
    %180 = vmatpush1.bf16.msra.mxu0 0
    %181 = vmatprep.subr.bf16.mxu0 0
    %182 = vmatpush1.bf16.msra.mxu0 0
    %183 = vmatprep.subr.bf16.mxu0 0
    %184 = vmatpush1.bf16.msra.mxu0 0
    %185 = vmatprep.subr.bf16.mxu0 0
    %186 = vmatpush1.bf16.msra.mxu0 0
    %187 = vmatprep.subr.bf16.mxu0 0
    %188 = vmatpush1.bf16.msra.mxu0 0
    %189 = vmatprep.subr.bf16.mxu0 0
    %190 = vmatpush1.bf16.msra.mxu0 0
    %191 = vmatprep.subr.bf16.mxu0 0
    %192 = vmatpush1.bf16.msra.mxu0 0
    %193 = vmatprep.subr.bf16.mxu0 0
    %194 = vmatpush1.bf16.msra.mxu0 0
    %195 = vmatprep.subr.bf16.mxu0 0
    %196 = vmatpush1.bf16.msra.mxu0 0
    %197 = vmatprep.subr.bf16.mxu0 0
    %198 = vmatpush1.bf16.msra.mxu0 0
    %199 = vmatprep.subr.bf16.mxu0 0
    %200 = vmatpush1.bf16.msra.mxu0 0
    %201 = vmatprep.subr.bf16.mxu0 0
    %202 = vmatpush1.bf16.msra.mxu0 0
    %203 = vmatprep.subr.bf16.mxu0 0
    %204 = vmatpush1.bf16.msra.mxu0 0
    %205 = vmatprep.mubr.bf16.mxu0 0
    %206 = vmatmul.mubr.bf16.gmra.mrb[0].mxu0 %v108
    %v207 = vpop.f32.mrb[0].mxu0
    %v208 = vadd.f32 0.0, %v207
    %v209 = vpop.f32.mrb[0].mxu0
    %v210 = vadd.f32 0.0, %v209
    %v211 = vpop.f32.mrb[0].mxu0
    %v212 = vpop.f32.mrb[0].mxu0
    %213 = vdwg.mxu0
    %214 = vmatprep.subr.bf16.mxu0 %v130
    %215 = vmatpush1.bf16.msra.mxu0 %v127
    %216 = vmatprep.subr.bf16.mxu0 0
    %217 = vmatpush1.bf16.msra.mxu0 0
    %218 = vmatprep.subr.bf16.mxu0 0
    %219 = vmatpush1.bf16.msra.mxu0 0
    %220 = vmatprep.subr.bf16.mxu0 0
    %221 = vmatpush1.bf16.msra.mxu0 0
    %222 = vmatprep.subr.bf16.mxu0 0
    %223 = vmatpush1.bf16.msra.mxu0 0
    %224 = vmatprep.subr.bf16.mxu0 0
    %225 = vmatpush1.bf16.msra.mxu0 0
    %226 = vmatprep.subr.bf16.mxu0 0
    %227 = vmatpush1.bf16.msra.mxu0 0
    %228 = vmatprep.subr.bf16.mxu0 0
    %229 = vmatpush1.bf16.msra.mxu0 0
    %230 = vmatprep.subr.bf16.mxu0 0
    %231 = vmatpush1.bf16.msra.mxu0 0
    %232 = vmatprep.subr.bf16.mxu0 0
    %233 = vmatpush1.bf16.msra.mxu0 0
    %234 = vmatprep.subr.bf16.mxu0 0
    %235 = vmatpush1.bf16.msra.mxu0 0
    %236 = vmatprep.subr.bf16.mxu0 0
    %237 = vmatpush1.bf16.msra.mxu0 0
    %238 = vmatprep.subr.bf16.mxu0 0
    %239 = vmatpush1.bf16.msra.mxu0 0
    %240 = vmatprep.subr.bf16.mxu0 0
    %241 = vmatpush1.bf16.msra.mxu0 0
    %242 = vmatprep.subr.bf16.mxu0 0
    %243 = vmatpush1.bf16.msra.mxu0 0
    %244 = vmatprep.subr.bf16.mxu0 0
    %245 = vmatpush1.bf16.msra.mxu0 0
    %246 = vmatprep.mubr.bf16.mxu0 0
    %247 = vmatmul.mubr.bf16.gmra.mrb[0].mxu0 %v108
    %v248 = vpop.f32.mrb[0].mxu0
    %v249 = vadd.f32 0.0, %v248
    %v250 = vpop.f32.mrb[0].mxu0
    %v251 = vadd.f32 0.0, %v250
    %v252 = vpop.f32.mrb[0].mxu0
    %v253 = vpop.f32.mrb[0].mxu0
    %254 = vdwg.mxu0
    %v255 = vmax.f32 %v167, 0.0
    %v256 = vmax.f32 %v169, 0.0
    %v257 = vmax.f32 %v208, 0.0
    %v258 = vmax.f32 %v210, 0.0
    %v259 = vmax.f32 %v249, 0.0
    %v260 = vmax.f32 %v251, 0.0
    %v261 = vmax.f32 %v255, %v258
    %v262 = vmax.f32 %v256, %v259
    %v263 = vmax.f32 %v257, %v260
    %v264 = vpack.c.bf16 %v261, %v261
    %v265 = vpack.c.bf16 %v262, %v262
    %v266 = vpack.c.bf16 %v263, %v263
    %v267 = vld [vmem:[#allocation4] sm:$0xff]
    %v268 = vld [vmem:[#allocation4 + $0x8] sm:$0xff]
    %v269 = vld [vmem:[#allocation4 + $0x10] sm:$0xff]
    %v270 = vld [vmem:[#allocation4 + $0x18] sm:$0xff]
    %v271 = vld [vmem:[#allocation4 + $0x20] sm:$0xff]
    %v272 = vld [vmem:[#allocation4 + $0x28] sm:$0xff]
    %v273 = vld [vmem:[#allocation4 + $0x30] sm:$0xff]
    %v274 = vld [vmem:[#allocation4 + $0x38] sm:$0xff]
    %v275 = vld [vmem:[#allocation4 + $0x40] sm:$0xff]
    %v276 = vld [vmem:[#allocation4 + $0x48] sm:$0xff]
    %v277 = vld [vmem:[#allocation4 + $0x50] sm:$0xff]
    %v278 = vld [vmem:[#allocation4 + $0x58] sm:$0xff]
    %v279 = vld [vmem:[#allocation4 + $0x60] sm:$0xff]
    %v280 = vld [vmem:[#allocation4 + $0x68] sm:$0xff]
    %v281 = vld [vmem:[#allocation4 + $0x70] sm:$0xff]
    %v282 = vld [vmem:[#allocation4 + $0x78] sm:$0xff]
    %v283 = vld [vmem:[#allocation4 + $0x80] sm:$0xff]
    %v284 = vld [vmem:[#allocation4 + $0x88] sm:$0xff]
    %v285 = vld [vmem:[#allocation4 + $0x90] sm:$0xff]
    %v286 = vld [vmem:[#allocation4 + $0x98] sm:$0xff]
    %v287 = vld [vmem:[#allocation4 + $0xa0] sm:$0xff]
    %v288 = vld [vmem:[#allocation4 + $0xa8] sm:$0xff]
    %v289 = vld [vmem:[#allocation4 + $0xb0] sm:$0xff]
    %v290 = vld [vmem:[#allocation4 + $0xb8] sm:$0xff]
    %v291 = vld [vmem:[#allocation4 + $0xc0] sm:$0xff]
    %v292 = vld [vmem:[#allocation4 + $0xc8] sm:$0xff]
    %v293 = vld [vmem:[#allocation4 + $0xd0] sm:$0xff]
    %v294 = vld [vmem:[#allocation4 + $0xd8] sm:$0xff]
    %v295 = vld [vmem:[#allocation4 + $0xe0] sm:$0xff]
    %v296 = vld [vmem:[#allocation4 + $0xe8] sm:$0xff]
    %v297 = vld [vmem:[#allocation4 + $0xf0] sm:$0xff]
    %v298 = vld [vmem:[#allocation4 + $0xf8] sm:$0xff]
    %v299 = vld [vmem:[#allocation4 + $0x100] sm:$0xff]
    %v300 = vld [vmem:[#allocation4 + $0x108] sm:$0xff]
    %v301 = vld [vmem:[#allocation4 + $0x110] sm:$0xff]
    %v302 = vld [vmem:[#allocation4 + $0x118] sm:$0xff]
    %v303 = vld [vmem:[#allocation4 + $0x120] sm:$0xff]
    %v304 = vld [vmem:[#allocation4 + $0x128] sm:$0xff]
    %v305 = vld [vmem:[#allocation4 + $0x130] sm:$0xff]
    %v306 = vld [vmem:[#allocation4 + $0x138] sm:$0xff]
    %v307 = vld [vmem:[#allocation4 + $0x140] sm:$0xff]
    %v308 = vld [vmem:[#allocation4 + $0x148] sm:$0xff]
    %v309 = vld [vmem:[#allocation4 + $0x150] sm:$0xff]
    %v310 = vld [vmem:[#allocation4 + $0x158] sm:$0xff]
    %v311 = vld [vmem:[#allocation4 + $0x160] sm:$0xff]
    %v312 = vld [vmem:[#allocation4 + $0x168] sm:$0xff]
    %v313 = vld [vmem:[#allocation4 + $0x170] sm:$0xff]
    %v314 = vld [vmem:[#allocation4 + $0x178] sm:$0xff]
    %v315 = vld [vmem:[#allocation4 + $0x180] sm:$0xff]
    %v316 = vld [vmem:[#allocation4 + $0x188] sm:$0xff]
    %v317 = vld [vmem:[#allocation4 + $0x190] sm:$0xff]
    %v318 = vld [vmem:[#allocation4 + $0x198] sm:$0xff]
    %v319 = vld [vmem:[#allocation4 + $0x1a0] sm:$0xff]
    %v320 = vld [vmem:[#allocation4 + $0x1a8] sm:$0xff]
    %v321 = vld [vmem:[#allocation4 + $0x1b0] sm:$0xff]
    %v322 = vld [vmem:[#allocation4 + $0x1b8] sm:$0xff]
    %v323 = vld [vmem:[#allocation4 + $0x1c0] sm:$0xff]
    %v324 = vld [vmem:[#allocation4 + $0x1c8] sm:$0xff]
    %v325 = vld [vmem:[#allocation4 + $0x1d0] sm:$0xff]
    %v326 = vld [vmem:[#allocation4 + $0x1d8] sm:$0xff]
    %v327 = vld [vmem:[#allocation4 + $0x1e0] sm:$0xff]
    %v328 = vld [vmem:[#allocation4 + $0x1e8] sm:$0xff]
    %v329 = vld [vmem:[#allocation4 + $0x1f0] sm:$0xff]
    %v330 = vld [vmem:[#allocation4 + $0x1f8] sm:$0xff]
    %v331 = vld [vmem:[#allocation4 + $0x200] sm:$0xff]
    %v332 = vld [vmem:[#allocation4 + $0x208] sm:$0xff]
    %v333 = vld [vmem:[#allocation4 + $0x210] sm:$0xff]
    %v334 = vld [vmem:[#allocation4 + $0x218] sm:$0xff]
    %v335 = vld [vmem:[#allocation4 + $0x220] sm:$0xff]
    %v336 = vld [vmem:[#allocation4 + $0x228] sm:$0xff]
    %v337 = vld [vmem:[#allocation4 + $0x230] sm:$0xff]
    %v338 = vld [vmem:[#allocation4 + $0x238] sm:$0xff]
    %v339 = vld [vmem:[#allocation4 + $0x240] sm:$0xff]
    %v340 = vld [vmem:[#allocation4 + $0x248] sm:$0xff]
    %v341 = vld [vmem:[#allocation4 + $0x250] sm:$0xff]
    %v342 = vld [vmem:[#allocation4 + $0x258] sm:$0xff]
    %v343 = vld [vmem:[#allocation4 + $0x260] sm:$0xff]
    %v344 = vld [vmem:[#allocation4 + $0x268] sm:$0xff]
    %v345 = vld [vmem:[#allocation4 + $0x270] sm:$0xff]
    %v346 = vld [vmem:[#allocation4 + $0x278] sm:$0xff]
    %v347 = vld [vmem:[#allocation4 + $0x280] sm:$0xff]
    %v348 = vld [vmem:[#allocation4 + $0x288] sm:$0xff]
    %v349 = vld [vmem:[#allocation4 + $0x290] sm:$0xff]
    %v350 = vld [vmem:[#allocation4 + $0x298] sm:$0xff]
    %v351 = vld [vmem:[#allocation4 + $0x2a0] sm:$0xff]
    %v352 = vld [vmem:[#allocation4 + $0x2a8] sm:$0xff]
    %v353 = vld [vmem:[#allocation4 + $0x2b0] sm:$0xff]
    %v354 = vld [vmem:[#allocation4 + $0x2b8] sm:$0xff]
    %v355 = vld [vmem:[#allocation4 + $0x2c0] sm:$0xff]
    %v356 = vld [vmem:[#allocation4 + $0x2c8] sm:$0xff]
    %v357 = vld [vmem:[#allocation4 + $0x2d0] sm:$0xff]
    %v358 = vld [vmem:[#allocation4 + $0x2d8] sm:$0xff]
    %v359 = vld [vmem:[#allocation4 + $0x2e0] sm:$0xff]
    %v360 = vld [vmem:[#allocation4 + $0x2e8] sm:$0xff]
    %v361 = vld [vmem:[#allocation4 + $0x2f0] sm:$0xff]
    %v362 = vld [vmem:[#allocation4 + $0x2f8] sm:$0xff]
    %v363 = vld [vmem:[#allocation6] sm:$0xf]
    %v365 = vlaneseq
    %v366 = vshrl.u32 %v365, 7
    %v367 = vsub.s32 0, %v366
    %v368 = vrot.slane %v363, %v367
    %v369 = vlaneseq
    %v370 = vshrl.u32 %v369, 7
    %v371 = vsub.s32 1, %v370
    %v372 = vrot.slane %v363, %v371
    %v373 = vlaneseq
    %v374 = vshrl.u32 %v373, 7
    %v375 = vsub.s32 2, %v374
    %v376 = vrot.slane %v363, %v375
    %v377 = vlaneseq
    %v378 = vshrl.u32 %v377, 7
    %v379 = vsub.s32 3, %v378
    %v380 = vrot.slane %v363, %v379
    %v481 = vunpack.c.l.b16 %v267
    %v482 = vunpack.c.h.b16 %v267
    %v483 = vunpack.c.l.b16 %v268
    %v484 = vunpack.c.h.b16 %v268
    %v485 = vunpack.c.l.b16 %v269
    %v486 = vunpack.c.h.b16 %v269
    %v487 = vunpack.c.l.b16 %v270
    %v488 = vunpack.c.h.b16 %v270
    %v489 = vunpack.c.l.b16 %v271
    %v490 = vunpack.c.h.b16 %v271
    %v491 = vunpack.c.l.b16 %v272
    %v492 = vunpack.c.h.b16 %v272
    %v493 = vunpack.c.l.b16 %v273
    %v494 = vunpack.c.h.b16 %v273
    %v495 = vunpack.c.l.b16 %v274
    %v496 = vunpack.c.h.b16 %v274
    %v497 = vunpack.c.l.b16 %v275
    %v498 = vunpack.c.h.b16 %v275
    %v499 = vunpack.c.l.b16 %v276
    %v500 = vunpack.c.h.b16 %v276
    %v501 = vunpack.c.l.b16 %v277
    %v502 = vunpack.c.h.b16 %v277
    %v503 = vunpack.c.l.b16 %v278
    %v504 = vunpack.c.h.b16 %v278
    %v505 = vunpack.c.l.b16 %v279
    %v506 = vunpack.c.h.b16 %v279
    %v507 = vunpack.c.l.b16 %v280
    %v508 = vunpack.c.h.b16 %v280
    %v509 = vunpack.c.l.b16 %v281
    %v510 = vunpack.c.h.b16 %v281
    %v511 = vunpack.c.l.b16 %v282
    %v512 = vunpack.c.h.b16 %v282
    %v513 = vunpack.c.l.b16 %v283
    %v514 = vunpack.c.h.b16 %v283
    %v515 = vunpack.c.l.b16 %v284
    %v516 = vunpack.c.h.b16 %v284
    %v517 = vunpack.c.l.b16 %v285
    %v518 = vunpack.c.h.b16 %v285
    %v519 = vunpack.c.l.b16 %v286
    %v520 = vunpack.c.h.b16 %v286
    %v521 = vunpack.c.l.b16 %v287
    %v522 = vunpack.c.h.b16 %v287
    %v523 = vunpack.c.l.b16 %v288
    %v524 = vunpack.c.h.b16 %v288
    %v525 = vunpack.c.l.b16 %v289
    %v526 = vunpack.c.h.b16 %v289
    %v527 = vunpack.c.l.b16 %v290
    %v528 = vunpack.c.h.b16 %v290
    %v529 = vunpack.c.l.b16 %v291
    %v530 = vunpack.c.h.b16 %v291
    %v531 = vunpack.c.l.b16 %v292
    %v532 = vunpack.c.h.b16 %v292
    %v533 = vunpack.c.l.b16 %v293
    %v534 = vunpack.c.h.b16 %v293
    %v535 = vunpack.c.l.b16 %v294
    %v536 = vunpack.c.h.b16 %v294
    %v537 = vunpack.c.l.b16 %v295
    %v538 = vunpack.c.h.b16 %v295
    %v539 = vunpack.c.l.b16 %v296
    %v540 = vunpack.c.h.b16 %v296
    %v541 = vunpack.c.l.b16 %v297
    %v542 = vunpack.c.h.b16 %v297
    %v543 = vunpack.c.l.b16 %v298
    %v544 = vunpack.c.h.b16 %v298
    %v545 = vunpack.c.l.b16 %v299
    %v546 = vunpack.c.h.b16 %v299
    %v547 = vunpack.c.l.b16 %v300
    %v548 = vunpack.c.h.b16 %v300
    %v549 = vunpack.c.l.b16 %v301
    %v550 = vunpack.c.h.b16 %v301
    %v551 = vunpack.c.l.b16 %v302
    %v552 = vunpack.c.h.b16 %v302
    %v553 = vunpack.c.l.b16 %v303
    %v554 = vunpack.c.h.b16 %v303
    %v555 = vunpack.c.l.b16 %v304
    %v556 = vunpack.c.h.b16 %v304
    %v557 = vunpack.c.l.b16 %v305
    %v558 = vunpack.c.h.b16 %v305
    %v559 = vunpack.c.l.b16 %v306
    %v560 = vunpack.c.h.b16 %v306
    %v561 = vunpack.c.l.b16 %v307
    %v562 = vunpack.c.h.b16 %v307
    %v563 = vunpack.c.l.b16 %v308
    %v564 = vunpack.c.h.b16 %v308
    %v565 = vunpack.c.l.b16 %v309
    %v566 = vunpack.c.h.b16 %v309
    %v567 = vunpack.c.l.b16 %v310
    %v568 = vunpack.c.h.b16 %v310
    %v569 = vunpack.c.l.b16 %v311
    %v570 = vunpack.c.h.b16 %v311
    %v571 = vunpack.c.l.b16 %v312
    %v572 = vunpack.c.h.b16 %v312
    %v573 = vunpack.c.l.b16 %v313
    %v574 = vunpack.c.h.b16 %v313
    %v575 = vunpack.c.l.b16 %v314
    %v576 = vunpack.c.h.b16 %v314
    %v577 = vunpack.c.l.b16 %v315
    %v578 = vunpack.c.h.b16 %v315
    %v579 = vunpack.c.l.b16 %v316
    %v580 = vunpack.c.h.b16 %v316
    %v581 = vunpack.c.l.b16 %v317
    %v582 = vunpack.c.h.b16 %v317
    %v583 = vunpack.c.l.b16 %v318
    %v584 = vunpack.c.h.b16 %v318
    %v585 = vunpack.c.l.b16 %v319
    %v586 = vunpack.c.h.b16 %v319
    %v587 = vunpack.c.l.b16 %v320
    %v588 = vunpack.c.h.b16 %v320
    %v589 = vunpack.c.l.b16 %v321
    %v590 = vunpack.c.h.b16 %v321
    %v591 = vunpack.c.l.b16 %v322
    %v592 = vunpack.c.h.b16 %v322
    %v593 = vunpack.c.l.b16 %v323
    %v594 = vunpack.c.h.b16 %v323
    %v595 = vunpack.c.l.b16 %v324
    %v596 = vunpack.c.h.b16 %v324
    %v597 = vunpack.c.l.b16 %v325
    %v598 = vunpack.c.h.b16 %v325
    %v599 = vunpack.c.l.b16 %v326
    %v600 = vunpack.c.h.b16 %v326
    %v601 = vunpack.c.l.b16 %v327
    %v602 = vunpack.c.h.b16 %v327
    %v603 = vunpack.c.l.b16 %v328
    %v604 = vunpack.c.h.b16 %v328
    %v605 = vunpack.c.l.b16 %v329
    %v606 = vunpack.c.h.b16 %v329
    %v607 = vunpack.c.l.b16 %v330
    %v608 = vunpack.c.h.b16 %v330
    %v609 = vunpack.c.l.b16 %v331
    %v610 = vunpack.c.h.b16 %v331
    %v611 = vunpack.c.l.b16 %v332
    %v612 = vunpack.c.h.b16 %v332
    %v613 = vunpack.c.l.b16 %v333
    %v614 = vunpack.c.h.b16 %v333
    %v615 = vunpack.c.l.b16 %v334
    %v616 = vunpack.c.h.b16 %v334
    %v617 = vunpack.c.l.b16 %v335
    %v618 = vunpack.c.h.b16 %v335
    %v619 = vunpack.c.l.b16 %v336
    %v620 = vunpack.c.h.b16 %v336
    %v621 = vunpack.c.l.b16 %v337
    %v622 = vunpack.c.h.b16 %v337
    %v623 = vunpack.c.l.b16 %v338
    %v624 = vunpack.c.h.b16 %v338
    %v625 = vunpack.c.l.b16 %v339
    %v626 = vunpack.c.h.b16 %v339
    %v627 = vunpack.c.l.b16 %v340
    %v628 = vunpack.c.h.b16 %v340
    %v629 = vunpack.c.l.b16 %v341
    %v630 = vunpack.c.h.b16 %v341
    %v631 = vunpack.c.l.b16 %v342
    %v632 = vunpack.c.h.b16 %v342
    %v633 = vunpack.c.l.b16 %v343
    %v634 = vunpack.c.h.b16 %v343
    %v635 = vunpack.c.l.b16 %v344
    %v636 = vunpack.c.h.b16 %v344
    %v637 = vunpack.c.l.b16 %v345
    %v638 = vunpack.c.h.b16 %v345
    %v639 = vunpack.c.l.b16 %v346
    %v640 = vunpack.c.h.b16 %v346
    %v641 = vunpack.c.l.b16 %v347
    %v642 = vunpack.c.h.b16 %v347
    %v643 = vunpack.c.l.b16 %v348
    %v644 = vunpack.c.h.b16 %v348
    %v645 = vunpack.c.l.b16 %v349
    %v646 = vunpack.c.h.b16 %v349
    %v647 = vunpack.c.l.b16 %v350
    %v648 = vunpack.c.h.b16 %v350
    %v649 = vunpack.c.l.b16 %v351
    %v650 = vunpack.c.h.b16 %v351
    %v651 = vunpack.c.l.b16 %v352
    %v652 = vunpack.c.h.b16 %v352
    %v653 = vunpack.c.l.b16 %v353
    %v654 = vunpack.c.h.b16 %v353
    %v655 = vunpack.c.l.b16 %v354
    %v656 = vunpack.c.h.b16 %v354
    %v657 = vunpack.c.l.b16 %v355
    %v658 = vunpack.c.h.b16 %v355
    %v659 = vunpack.c.l.b16 %v356
    %v660 = vunpack.c.h.b16 %v356
    %v661 = vunpack.c.l.b16 %v357
    %v662 = vunpack.c.h.b16 %v357
    %v663 = vunpack.c.l.b16 %v358
    %v664 = vunpack.c.h.b16 %v358
    %v665 = vunpack.c.l.b16 %v359
    %v666 = vunpack.c.h.b16 %v359
    %v667 = vunpack.c.l.b16 %v360
    %v668 = vunpack.c.h.b16 %v360
    %v669 = vunpack.c.l.b16 %v361
    %v670 = vunpack.c.h.b16 %v361
    %v671 = vunpack.c.l.b16 %v362
    %v672 = vunpack.c.h.b16 %v362
    %v673 = vpack.c.b16 %v485, %v481
    %v674 = vpack.c.b16 %v486, %v482
    %v675 = vpack.c.b16 %v487, %v483
    %v676 = vpack.c.b16 %v488, %v484
    %v677 = vpack.c.b16 %v493, %v489
    %v678 = vpack.c.b16 %v494, %v490
    %v679 = vpack.c.b16 %v495, %v491
    %v680 = vpack.c.b16 %v496, %v492
    %v681 = vpack.c.b16 %v501, %v497
    %v682 = vpack.c.b16 %v502, %v498
    %v683 = vpack.c.b16 %v503, %v499
    %v684 = vpack.c.b16 %v504, %v500
    %v685 = vpack.c.b16 %v509, %v505
    %v686 = vpack.c.b16 %v510, %v506
    %v687 = vpack.c.b16 %v511, %v507
    %v688 = vpack.c.b16 %v512, %v508
    %v689 = vpack.c.b16 %v517, %v513
    %v690 = vpack.c.b16 %v518, %v514
    %v691 = vpack.c.b16 %v519, %v515
    %v692 = vpack.c.b16 %v520, %v516
    %v693 = vpack.c.b16 %v525, %v521
    %v694 = vpack.c.b16 %v526, %v522
    %v695 = vpack.c.b16 %v527, %v523
    %v696 = vpack.c.b16 %v528, %v524
    %v697 = vpack.c.b16 %v533, %v529
    %v698 = vpack.c.b16 %v534, %v530
    %v699 = vpack.c.b16 %v535, %v531
    %v700 = vpack.c.b16 %v536, %v532
    %v701 = vpack.c.b16 %v541, %v537
    %v702 = vpack.c.b16 %v542, %v538
    %v703 = vpack.c.b16 %v543, %v539
    %v704 = vpack.c.b16 %v544, %v540
    %v705 = vpack.c.b16 %v549, %v545
    %v706 = vpack.c.b16 %v550, %v546
    %v707 = vpack.c.b16 %v551, %v547
    %v708 = vpack.c.b16 %v552, %v548
    %v709 = vpack.c.b16 %v557, %v553
    %v710 = vpack.c.b16 %v558, %v554
    %v711 = vpack.c.b16 %v559, %v555
    %v712 = vpack.c.b16 %v560, %v556
    %v713 = vpack.c.b16 %v565, %v561
    %v714 = vpack.c.b16 %v566, %v562
    %v715 = vpack.c.b16 %v567, %v563
    %v716 = vpack.c.b16 %v568, %v564
    %v717 = vpack.c.b16 %v573, %v569
    %v718 = vpack.c.b16 %v574, %v570
    %v719 = vpack.c.b16 %v575, %v571
    %v720 = vpack.c.b16 %v576, %v572
    %v721 = vpack.c.b16 %v581, %v577
    %v722 = vpack.c.b16 %v582, %v578
    %v723 = vpack.c.b16 %v583, %v579
    %v724 = vpack.c.b16 %v584, %v580
    %v725 = vpack.c.b16 %v589, %v585
    %v726 = vpack.c.b16 %v590, %v586
    %v727 = vpack.c.b16 %v591, %v587
    %v728 = vpack.c.b16 %v592, %v588
    %v729 = vpack.c.b16 %v597, %v593
    %v730 = vpack.c.b16 %v598, %v594
    %v731 = vpack.c.b16 %v599, %v595
    %v732 = vpack.c.b16 %v600, %v596
    %v733 = vpack.c.b16 %v605, %v601
    %v734 = vpack.c.b16 %v606, %v602
    %v735 = vpack.c.b16 %v607, %v603
    %v736 = vpack.c.b16 %v608, %v604
    %v737 = vpack.c.b16 %v613, %v609
    %v738 = vpack.c.b16 %v614, %v610
    %v739 = vpack.c.b16 %v615, %v611
    %v740 = vpack.c.b16 %v616, %v612
    %v741 = vpack.c.b16 %v621, %v617
    %v742 = vpack.c.b16 %v622, %v618
    %v743 = vpack.c.b16 %v623, %v619
    %v744 = vpack.c.b16 %v624, %v620
    %v745 = vpack.c.b16 %v629, %v625
    %v746 = vpack.c.b16 %v630, %v626
    %v747 = vpack.c.b16 %v631, %v627
    %v748 = vpack.c.b16 %v632, %v628
    %v749 = vpack.c.b16 %v637, %v633
    %v750 = vpack.c.b16 %v638, %v634
    %v751 = vpack.c.b16 %v639, %v635
    %v752 = vpack.c.b16 %v640, %v636
    %v753 = vpack.c.b16 %v645, %v641
    %v754 = vpack.c.b16 %v646, %v642
    %v755 = vpack.c.b16 %v647, %v643
    %v756 = vpack.c.b16 %v648, %v644
    %v757 = vpack.c.b16 %v653, %v649
    %v758 = vpack.c.b16 %v654, %v650
    %v759 = vpack.c.b16 %v655, %v651
    %v760 = vpack.c.b16 %v656, %v652
    %v761 = vpack.c.b16 %v661, %v657
    %v762 = vpack.c.b16 %v662, %v658
    %v763 = vpack.c.b16 %v663, %v659
    %v764 = vpack.c.b16 %v664, %v660
    %v765 = vpack.c.b16 %v669, %v665
    %v766 = vpack.c.b16 %v670, %v666
    %v767 = vpack.c.b16 %v671, %v667
    %v768 = vpack.c.b16 %v672, %v668
    %865 = vmatprep.subr.bf16.mxu0 %v674
    %866 = vmatpush1.bf16.msra.mxu0 %v673
    %867 = vmatprep.subr.bf16.mxu0 %v678
    %868 = vmatpush1.bf16.msra.mxu0 %v677
    %869 = vmatprep.subr.bf16.mxu0 %v682
    %870 = vmatpush1.bf16.msra.mxu0 %v681
    %871 = vmatprep.subr.bf16.mxu0 %v686
    %872 = vmatpush1.bf16.msra.mxu0 %v685
    %873 = vmatprep.subr.bf16.mxu0 %v690
    %874 = vmatpush1.bf16.msra.mxu0 %v689
    %875 = vmatprep.subr.bf16.mxu0 %v694
    %876 = vmatpush1.bf16.msra.mxu0 %v693
    %877 = vmatprep.subr.bf16.mxu0 %v698
    %878 = vmatpush1.bf16.msra.mxu0 %v697
    %879 = vmatprep.subr.bf16.mxu0 %v702
    %880 = vmatpush1.bf16.msra.mxu0 %v701
    %881 = vmatprep.subr.bf16.mxu0 %v706
    %882 = vmatpush1.bf16.msra.mxu0 %v705
    %883 = vmatprep.subr.bf16.mxu0 %v710
    %884 = vmatpush1.bf16.msra.mxu0 %v709
    %885 = vmatprep.subr.bf16.mxu0 %v714
    %886 = vmatpush1.bf16.msra.mxu0 %v713
    %887 = vmatprep.subr.bf16.mxu0 %v718
    %888 = vmatpush1.bf16.msra.mxu0 %v717
    %889 = vmatprep.subr.bf16.mxu0 %v722
    %890 = vmatpush1.bf16.msra.mxu0 %v721
    %891 = vmatprep.subr.bf16.mxu0 %v726
    %892 = vmatpush1.bf16.msra.mxu0 %v725
    %893 = vmatprep.subr.bf16.mxu0 %v730
    %894 = vmatpush1.bf16.msra.mxu0 %v729
    %895 = vmatprep.subr.bf16.mxu0 %v734
    %896 = vmatpush1.bf16.msra.mxu0 %v733
    %897 = vmatprep.mubr.bf16.mxu0 %v265
    %898 = vmatmul.mubr.bf16.gmra.mrb[0].mxu0 %v264
    %v899 = vpop.f32.mrb[0].mxu0
    %v900 = vadd.f32 %v368, %v899
    %v901 = vpop.f32.mrb[0].mxu0
    %v902 = vadd.f32 %v372, %v901
    %v903 = vpop.f32.mrb[0].mxu0
    %v904 = vpop.f32.mrb[0].mxu0
    %905 = vdwg.mxu0
    %906 = vmatprep.subr.bf16.mxu0 %v738
    %907 = vmatpush1.bf16.msra.mxu0 %v737
    %908 = vmatprep.subr.bf16.mxu0 %v742
    %909 = vmatpush1.bf16.msra.mxu0 %v741
    %910 = vmatprep.subr.bf16.mxu0 %v746
    %911 = vmatpush1.bf16.msra.mxu0 %v745
    %912 = vmatprep.subr.bf16.mxu0 %v750
    %913 = vmatpush1.bf16.msra.mxu0 %v749
    %914 = vmatprep.subr.bf16.mxu0 %v754
    %915 = vmatpush1.bf16.msra.mxu0 %v753
    %916 = vmatprep.subr.bf16.mxu0 %v758
    %917 = vmatpush1.bf16.msra.mxu0 %v757
    %918 = vmatprep.subr.bf16.mxu0 %v762
    %919 = vmatpush1.bf16.msra.mxu0 %v761
    %920 = vmatprep.subr.bf16.mxu0 %v766
    %921 = vmatpush1.bf16.msra.mxu0 %v765
    %922 = vmatprep.subr.bf16.mxu0 0
    %923 = vmatpush1.bf16.msra.mxu0 0
    %924 = vmatprep.subr.bf16.mxu0 0
    %925 = vmatpush1.bf16.msra.mxu0 0
    %926 = vmatprep.subr.bf16.mxu0 0
    %927 = vmatpush1.bf16.msra.mxu0 0
    %928 = vmatprep.subr.bf16.mxu0 0
    %929 = vmatpush1.bf16.msra.mxu0 0
    %930 = vmatprep.subr.bf16.mxu0 0
    %931 = vmatpush1.bf16.msra.mxu0 0
    %932 = vmatprep.subr.bf16.mxu0 0
    %933 = vmatpush1.bf16.msra.mxu0 0
    %934 = vmatprep.subr.bf16.mxu0 0
    %935 = vmatpush1.bf16.msra.mxu0 0
    %936 = vmatprep.subr.bf16.mxu0 0
    %937 = vmatpush1.bf16.msra.mxu0 0
    %938 = vmatprep.mubr.bf16.mxu0 0
    %939 = vmatmul.mubr.bf16.gmra.mrb[0].mxu0 %v266
    %v940 = vpop.f32.mrb[0].mxu0
    %v941 = vadd.f32 %v900, %v940
    %v942 = vpop.f32.mrb[0].mxu0
    %v943 = vadd.f32 %v902, %v942
    %v944 = vpop.f32.mrb[0].mxu0
    %v945 = vpop.f32.mrb[0].mxu0
    %946 = vdwg.mxu0
    %947 = vmatprep.subr.bf16.mxu0 %v676
    %948 = vmatpush1.bf16.msra.mxu0 %v675
    %949 = vmatprep.subr.bf16.mxu0 %v680
    %950 = vmatpush1.bf16.msra.mxu0 %v679
    %951 = vmatprep.subr.bf16.mxu0 %v684
    %952 = vmatpush1.bf16.msra.mxu0 %v683
    %953 = vmatprep.subr.bf16.mxu0 %v688
    %954 = vmatpush1.bf16.msra.mxu0 %v687
    %955 = vmatprep.subr.bf16.mxu0 %v692
    %956 = vmatpush1.bf16.msra.mxu0 %v691
    %957 = vmatprep.subr.bf16.mxu0 %v696
    %958 = vmatpush1.bf16.msra.mxu0 %v695
    %959 = vmatprep.subr.bf16.mxu0 %v700
    %960 = vmatpush1.bf16.msra.mxu0 %v699
    %961 = vmatprep.subr.bf16.mxu0 %v704
    %962 = vmatpush1.bf16.msra.mxu0 %v703
    %963 = vmatprep.subr.bf16.mxu0 %v708
    %964 = vmatpush1.bf16.msra.mxu0 %v707
    %965 = vmatprep.subr.bf16.mxu0 %v712
    %966 = vmatpush1.bf16.msra.mxu0 %v711
    %967 = vmatprep.subr.bf16.mxu0 %v716
    %968 = vmatpush1.bf16.msra.mxu0 %v715
    %969 = vmatprep.subr.bf16.mxu0 %v720
    %970 = vmatpush1.bf16.msra.mxu0 %v719
    %971 = vmatprep.subr.bf16.mxu0 %v724
    %972 = vmatpush1.bf16.msra.mxu0 %v723
    %973 = vmatprep.subr.bf16.mxu0 %v728
    %974 = vmatpush1.bf16.msra.mxu0 %v727
    %975 = vmatprep.subr.bf16.mxu0 %v732
    %976 = vmatpush1.bf16.msra.mxu0 %v731
    %977 = vmatprep.subr.bf16.mxu0 %v736
    %978 = vmatpush1.bf16.msra.mxu0 %v735
    %979 = vmatprep.mubr.bf16.mxu0 %v265
    %980 = vmatmul.mubr.bf16.gmra.mrb[0].mxu0 %v264
    %v981 = vpop.f32.mrb[0].mxu0
    %v982 = vadd.f32 %v376, %v981
    %v983 = vpop.f32.mrb[0].mxu0
    %v984 = vadd.f32 %v380, %v983
    %v985 = vpop.f32.mrb[0].mxu0
    %v986 = vpop.f32.mrb[0].mxu0
    %987 = vdwg.mxu0
    %988 = vmatprep.subr.bf16.mxu0 %v740
    %989 = vmatpush1.bf16.msra.mxu0 %v739
    %990 = vmatprep.subr.bf16.mxu0 %v744
    %991 = vmatpush1.bf16.msra.mxu0 %v743
    %992 = vmatprep.subr.bf16.mxu0 %v748
    %993 = vmatpush1.bf16.msra.mxu0 %v747
    %994 = vmatprep.subr.bf16.mxu0 %v752
    %995 = vmatpush1.bf16.msra.mxu0 %v751
    %996 = vmatprep.subr.bf16.mxu0 %v756
    %997 = vmatpush1.bf16.msra.mxu0 %v755
    %998 = vmatprep.subr.bf16.mxu0 %v760
    %999 = vmatpush1.bf16.msra.mxu0 %v759
    %1000 = vmatprep.subr.bf16.mxu0 %v764
    %1001 = vmatpush1.bf16.msra.mxu0 %v763
    %1002 = vmatprep.subr.bf16.mxu0 %v768
    %1003 = vmatpush1.bf16.msra.mxu0 %v767
    %1004 = vmatprep.subr.bf16.mxu0 0
    %1005 = vmatpush1.bf16.msra.mxu0 0
    %1006 = vmatprep.subr.bf16.mxu0 0
    %1007 = vmatpush1.bf16.msra.mxu0 0
    %1008 = vmatprep.subr.bf16.mxu0 0
    %1009 = vmatpush1.bf16.msra.mxu0 0
    %1010 = vmatprep.subr.bf16.mxu0 0
    %1011 = vmatpush1.bf16.msra.mxu0 0
    %1012 = vmatprep.subr.bf16.mxu0 0
    %1013 = vmatpush1.bf16.msra.mxu0 0
    %1014 = vmatprep.subr.bf16.mxu0 0
    %1015 = vmatpush1.bf16.msra.mxu0 0
    %1016 = vmatprep.subr.bf16.mxu0 0
    %1017 = vmatpush1.bf16.msra.mxu0 0
    %1018 = vmatprep.subr.bf16.mxu0 0
    %1019 = vmatpush1.bf16.msra.mxu0 0
    %1020 = vmatprep.mubr.bf16.mxu0 0
    %1021 = vmatmul.mubr.bf16.gmra.mrb[0].mxu0 %v266
    %v1022 = vpop.f32.mrb[0].mxu0
    %v1023 = vadd.f32 %v982, %v1022
    %v1024 = vpop.f32.mrb[0].mxu0
    %v1025 = vadd.f32 %v984, %v1024
    %v1026 = vpop.f32.mrb[0].mxu0
    %v1027 = vpop.f32.mrb[0].mxu0
    %1028 = vdwg.mxu0
    %v1029 = vmax.f32 %v941, 0.0
    %v1030 = vmax.f32 %v943, 0.0
    %v1031 = vmax.f32 %v1023, 0.0
    %v1032 = vmax.f32 %v1025, 0.0
    %v1033 = vmax.f32 %v1029, %v1031
    %v1034 = vmax.f32 %v1030, %v1032
    %v1035 = vpack.c.bf16 %v1033, %v1033
    %v1036 = vpack.c.bf16 %v1034, %v1034
    %v1037 = vld [vmem:[%s4] sm:$0xf]
    %v1038 = vld [vmem:[%s4 + $0x4] sm:$0xf]
    %v1039 = vld [vmem:[%s4 + $0x8] sm:$0xf]
    %v1040 = vld [vmem:[%s4 + $0xc] sm:$0xf]
    %v1041 = vld [vmem:[%s4 + $0x10] sm:$0xf]
    %v1042 = vld [vmem:[%s4 + $0x14] sm:$0xf]
    %v1043 = vld [vmem:[%s4 + $0x18] sm:$0xf]
    %v1044 = vld [vmem:[%s4 + $0x1c] sm:$0xf]
    %v1045 = vld [vmem:[%s4 + $0x20] sm:$0xf]
    %v1046 = vld [vmem:[%s4 + $0x24] sm:$0xf]
    %v1047 = vld [vmem:[%s4 + $0x28] sm:$0xf]
    %v1048 = vld [vmem:[%s4 + $0x2c] sm:$0xf]
    %v1049 = vld [vmem:[%s4 + $0x30] sm:$0xf]
    %v1050 = vld [vmem:[%s4 + $0x34] sm:$0xf]
    %v1051 = vld [vmem:[%s4 + $0x38] sm:$0xf]
    %v1052 = vld [vmem:[%s4 + $0x3c] sm:$0xf]
    %v1053 = vld [vmem:[%s4 + $0x40] sm:$0xf]
    %v1054 = vld [vmem:[%s4 + $0x44] sm:$0xf]
    %v1055 = vld [vmem:[%s4 + $0x48] sm:$0xf]
    %v1056 = vld [vmem:[%s4 + $0x4c] sm:$0xf]
    %v1057 = vld [vmem:[%s4 + $0x50] sm:$0xf]
    %v1058 = vld [vmem:[%s4 + $0x54] sm:$0xf]
    %v1059 = vld [vmem:[%s4 + $0x58] sm:$0xf]
    %v1060 = vld [vmem:[%s4 + $0x5c] sm:$0xf]
    %v1061 = vld [vmem:[%s4 + $0x60] sm:$0xf]
    %v1062 = vld [vmem:[%s4 + $0x64] sm:$0xf]
    %v1063 = vld [vmem:[%s4 + $0x68] sm:$0xf]
    %v1064 = vld [vmem:[%s4 + $0x6c] sm:$0xf]
    %v1065 = vld [vmem:[%s4 + $0x70] sm:$0xf]
    %v1066 = vld [vmem:[%s4 + $0x74] sm:$0xf]
    %v1067 = vld [vmem:[%s4 + $0x78] sm:$0xf]
    %v1068 = vld [vmem:[%s4 + $0x7c] sm:$0xf]
    %v1069 = vld [vmem:[%s5] sm:$0x1]
    %v1071 = vlaneseq
    %v1072 = vshrl.u32 %v1071, 7
    %v1073 = vsub.s32 0, %v1072
    %v1074 = vrot.slane %v1069, %v1073
    %v1108 = vunpack.c.l.b16 %v1037
    %v1109 = vunpack.c.l.b16 %v1038
    %v1110 = vunpack.c.l.b16 %v1039
    %v1111 = vunpack.c.l.b16 %v1040
    %v1112 = vunpack.c.l.b16 %v1041
    %v1113 = vunpack.c.l.b16 %v1042
    %v1114 = vunpack.c.l.b16 %v1043
    %v1115 = vunpack.c.l.b16 %v1044
    %v1116 = vunpack.c.l.b16 %v1045
    %v1117 = vunpack.c.l.b16 %v1046
    %v1118 = vunpack.c.l.b16 %v1047
    %v1119 = vunpack.c.l.b16 %v1048
    %v1120 = vunpack.c.l.b16 %v1049
    %v1121 = vunpack.c.l.b16 %v1050
    %v1122 = vunpack.c.l.b16 %v1051
    %v1123 = vunpack.c.l.b16 %v1052
    %v1124 = vunpack.c.l.b16 %v1053
    %v1125 = vunpack.c.l.b16 %v1054
    %v1126 = vunpack.c.l.b16 %v1055
    %v1127 = vunpack.c.l.b16 %v1056
    %v1128 = vunpack.c.l.b16 %v1057
    %v1129 = vunpack.c.l.b16 %v1058
    %v1130 = vunpack.c.l.b16 %v1059
    %v1131 = vunpack.c.l.b16 %v1060
    %v1132 = vunpack.c.l.b16 %v1061
    %v1133 = vunpack.c.l.b16 %v1062
    %v1134 = vunpack.c.l.b16 %v1063
    %v1135 = vunpack.c.l.b16 %v1064
    %v1136 = vunpack.c.l.b16 %v1065
    %v1137 = vunpack.c.l.b16 %v1066
    %v1138 = vunpack.c.l.b16 %v1067
    %v1139 = vunpack.c.l.b16 %v1068
    %v1140 = vpack.c.b16 %v1109, %v1108
    %v1141 = vpack.c.b16 %v1111, %v1110
    %v1142 = vpack.c.b16 %v1113, %v1112
    %v1143 = vpack.c.b16 %v1115, %v1114
    %v1144 = vpack.c.b16 %v1117, %v1116
    %v1145 = vpack.c.b16 %v1119, %v1118
    %v1146 = vpack.c.b16 %v1121, %v1120
    %v1147 = vpack.c.b16 %v1123, %v1122
    %v1148 = vpack.c.b16 %v1125, %v1124
    %v1149 = vpack.c.b16 %v1127, %v1126
    %v1150 = vpack.c.b16 %v1129, %v1128
    %v1151 = vpack.c.b16 %v1131, %v1130
    %v1152 = vpack.c.b16 %v1133, %v1132
    %v1153 = vpack.c.b16 %v1135, %v1134
    %v1154 = vpack.c.b16 %v1137, %v1136
    %v1155 = vpack.c.b16 %v1139, %v1138
    %1172 = vmatprep.subr.bf16.mxu0 0
    %1173 = vmatpush1.bf16.msra.mxu0 %v1140
    %1174 = vmatprep.subr.bf16.mxu0 0
    %1175 = vmatpush1.bf16.msra.mxu0 %v1141
    %1176 = vmatprep.subr.bf16.mxu0 0
    %1177 = vmatpush1.bf16.msra.mxu0 %v1142
    %1178 = vmatprep.subr.bf16.mxu0 0
    %1179 = vmatpush1.bf16.msra.mxu0 %v1143
    %1180 = vmatprep.subr.bf16.mxu0 0
    %1181 = vmatpush1.bf16.msra.mxu0 %v1144
    %1182 = vmatprep.subr.bf16.mxu0 0
    %1183 = vmatpush1.bf16.msra.mxu0 %v1145
    %1184 = vmatprep.subr.bf16.mxu0 0
    %1185 = vmatpush1.bf16.msra.mxu0 %v1146
    %1186 = vmatprep.subr.bf16.mxu0 0
    %1187 = vmatpush1.bf16.msra.mxu0 %v1147
    %1188 = vmatprep.subr.bf16.mxu0 0
    %1189 = vmatpush1.bf16.msra.mxu0 %v1148
    %1190 = vmatprep.subr.bf16.mxu0 0
    %1191 = vmatpush1.bf16.msra.mxu0 %v1149
    %1192 = vmatprep.subr.bf16.mxu0 0
    %1193 = vmatpush1.bf16.msra.mxu0 %v1150
    %1194 = vmatprep.subr.bf16.mxu0 0
    %1195 = vmatpush1.bf16.msra.mxu0 %v1151
    %1196 = vmatprep.subr.bf16.mxu0 0
    %1197 = vmatpush1.bf16.msra.mxu0 %v1152
    %1198 = vmatprep.subr.bf16.mxu0 0
    %1199 = vmatpush1.bf16.msra.mxu0 %v1153
    %1200 = vmatprep.subr.bf16.mxu0 0
    %1201 = vmatpush1.bf16.msra.mxu0 %v1154
    %1202 = vmatprep.subr.bf16.mxu0 0
    %1203 = vmatpush1.bf16.msra.mxu0 %v1155
    %1204 = vmatprep.mubr.bf16.mxu0 %v1036
    %1205 = vmatmul.mubr.bf16.gmra.mrb[0].mxu0 %v1035
    %v1206 = vpop.f32.mrb[0].mxu0
    %v1207 = vadd.f32 %v1074, %v1206
    %v1208 = vpop.f32.mrb[0].mxu0
    %v1209 = vpop.f32.mrb[0].mxu0
    %v1210 = vpop.f32.mrb[0].mxu0
    %1211 = vdwg.mxu0
    %v1212 = vmax.f32 %v1207, 0.0
    %v1213 = vpack.c.bf16 %v1212, %v1212
    %v1214 = vld [vmem:[%s6] sm:$0xf]
    %v1215 = vld [vmem:[%s6 + $0x4] sm:$0xf]
    %v1216 = vld [vmem:[%s6 + $0x8] sm:$0xf]
    %v1217 = vld [vmem:[%s6 + $0xc] sm:$0xf]
    %v1218 = vld [vmem:[%s6 + $0x10] sm:$0xf]
    %v1219 = vld [vmem:[%s6 + $0x14] sm:$0xf]
    %v1220 = vld [vmem:[%s6 + $0x18] sm:$0xf]
    %v1221 = vld [vmem:[%s6 + $0x1c] sm:$0xf]
    %v1222 = vld [vmem:[%s6 + $0x20] sm:$0xf]
    %v1223 = vld [vmem:[%s6 + $0x24] sm:$0xf]
    %v1224 = vld [vmem:[%s6 + $0x28] sm:$0xf]
    %v1225 = vld [vmem:[%s6 + $0x2c] sm:$0xf]
    %v1226 = vld [vmem:[%s6 + $0x30] sm:$0xf]
    %v1227 = vld [vmem:[%s6 + $0x34] sm:$0xf]
    %v1228 = vld [vmem:[%s6 + $0x38] sm:$0xf]
    %v1229 = vld [vmem:[%s6 + $0x3c] sm:$0xf]
    %v1230 = vld [vmem:[%s7] sm:$0x1]
    %v1232 = vlaneseq
    %v1233 = vshrl.u32 %v1232, 7
    %v1234 = vsub.s32 0, %v1233
    %v1235 = vrot.slane %v1230, %v1234
    %v1253 = vunpack.c.l.b16 %v1214
    %v1254 = vunpack.c.l.b16 %v1215
    %v1255 = vunpack.c.l.b16 %v1216
    %v1256 = vunpack.c.l.b16 %v1217
    %v1257 = vunpack.c.l.b16 %v1218
    %v1258 = vunpack.c.l.b16 %v1219
    %v1259 = vunpack.c.l.b16 %v1220
    %v1260 = vunpack.c.l.b16 %v1221
    %v1261 = vunpack.c.l.b16 %v1222
    %v1262 = vunpack.c.l.b16 %v1223
    %v1263 = vunpack.c.l.b16 %v1224
    %v1264 = vunpack.c.l.b16 %v1225
    %v1265 = vunpack.c.l.b16 %v1226
    %v1266 = vunpack.c.l.b16 %v1227
    %v1267 = vunpack.c.l.b16 %v1228
    %v1268 = vunpack.c.l.b16 %v1229
    %v1269 = vpack.c.b16 %v1254, %v1253
    %v1270 = vpack.c.b16 %v1256, %v1255
    %v1271 = vpack.c.b16 %v1258, %v1257
    %v1272 = vpack.c.b16 %v1260, %v1259
    %v1273 = vpack.c.b16 %v1262, %v1261
    %v1274 = vpack.c.b16 %v1264, %v1263
    %v1275 = vpack.c.b16 %v1266, %v1265
    %v1276 = vpack.c.b16 %v1268, %v1267
    %1285 = vmatprep.subr.bf16.mxu0 0
    %1286 = vmatpush1.bf16.msra.mxu0 %v1269
    %1287 = vmatprep.subr.bf16.mxu0 0
    %1288 = vmatpush1.bf16.msra.mxu0 %v1270
    %1289 = vmatprep.subr.bf16.mxu0 0
    %1290 = vmatpush1.bf16.msra.mxu0 %v1271
    %1291 = vmatprep.subr.bf16.mxu0 0
    %1292 = vmatpush1.bf16.msra.mxu0 %v1272
    %1293 = vmatprep.subr.bf16.mxu0 0
    %1294 = vmatpush1.bf16.msra.mxu0 %v1273
    %1295 = vmatprep.subr.bf16.mxu0 0
    %1296 = vmatpush1.bf16.msra.mxu0 %v1274
    %1297 = vmatprep.subr.bf16.mxu0 0
    %1298 = vmatpush1.bf16.msra.mxu0 %v1275
    %1299 = vmatprep.subr.bf16.mxu0 0
    %1300 = vmatpush1.bf16.msra.mxu0 %v1276
    %1301 = vmatprep.subr.bf16.mxu0 0
    %1302 = vmatpush1.bf16.msra.mxu0 0
    %1303 = vmatprep.subr.bf16.mxu0 0
    %1304 = vmatpush1.bf16.msra.mxu0 0
    %1305 = vmatprep.subr.bf16.mxu0 0
    %1306 = vmatpush1.bf16.msra.mxu0 0
    %1307 = vmatprep.subr.bf16.mxu0 0
    %1308 = vmatpush1.bf16.msra.mxu0 0
    %1309 = vmatprep.subr.bf16.mxu0 0
    %1310 = vmatpush1.bf16.msra.mxu0 0
    %1311 = vmatprep.subr.bf16.mxu0 0
    %1312 = vmatpush1.bf16.msra.mxu0 0
    %1313 = vmatprep.subr.bf16.mxu0 0
    %1314 = vmatpush1.bf16.msra.mxu0 0
    %1315 = vmatprep.subr.bf16.mxu0 0
    %1316 = vmatpush1.bf16.msra.mxu0 0
    %1317 = vmatprep.mubr.bf16.mxu0 0
    %1318 = vmatmul.mubr.bf16.gmra.mrb[0].mxu0 %v1213
    %v1319 = vpop.f32.mrb[0].mxu0
    %v1320 = vadd.f32 %v1235, %v1319
    %v1321 = vpop.f32.mrb[0].mxu0
    %v1322 = vpop.f32.mrb[0].mxu0
    %v1323 = vpop.f32.mrb[0].mxu0
    %1324 = vdwg.mxu0
    %v1325 = vmax.f32 %v1320, 0.0
    %v1326 = vpack.c.bf16 %v1325, %v1325
    %v1327 = vld [vmem:[%s8] sm:$0xf]
    %v1328 = vld [vmem:[%s8 + $0x4] sm:$0xf]
    %v1329 = vld [vmem:[%s8 + $0x8] sm:$0xf]
    %v1330 = vld [vmem:[%s8 + $0xc] sm:$0xf]
    %v1331 = vld [vmem:[%s8 + $0x10] sm:$0xf]
    %v1332 = vld [vmem:[%s8 + $0x14] sm:$0xf]
    %v1333 = vld [vmem:[%s8 + $0x18] sm:$0xf]
    %v1334 = vld [vmem:[%s8 + $0x1c] sm:$0xf]
    %v1335 = vld [vmem:[%s9] sm:$0x1]
    %v1337 = vlaneseq
    %v1338 = vshrl.u32 %v1337, 7
    %v1339 = vsub.s32 0, %v1338
    %v1340 = vrot.slane %v1335, %v1339
    %v1350 = vunpack.c.l.b16 %v1327
    %v1351 = vunpack.c.l.b16 %v1328
    %v1352 = vunpack.c.l.b16 %v1329
    %v1353 = vunpack.c.l.b16 %v1330
    %v1354 = vunpack.c.l.b16 %v1331
    %v1355 = vunpack.c.l.b16 %v1332
    %v1356 = vunpack.c.l.b16 %v1333
    %v1357 = vunpack.c.l.b16 %v1334
    %v1358 = vpack.c.b16 %v1351, %v1350
    %v1359 = vpack.c.b16 %v1353, %v1352
    %v1360 = vpack.c.b16 %v1355, %v1354
    %v1361 = vpack.c.b16 %v1357, %v1356
    %vm1366 = vcmask 523264
    %v1368 = vsel %vm1366, %v1326, 0
    %1370 = vmatprep.subr.bf16.mxu0 0
    %1371 = vmatpush1.bf16.msra.mxu0 %v1358
    %1372 = vmatprep.subr.bf16.mxu0 0
    %1373 = vmatpush1.bf16.msra.mxu0 %v1359
    %1374 = vmatprep.subr.bf16.mxu0 0
    %1375 = vmatpush1.bf16.msra.mxu0 %v1360
    %1376 = vmatprep.subr.bf16.mxu0 0
    %1377 = vmatpush1.bf16.msra.mxu0 %v1361
    %1378 = vmatprep.subr.bf16.mxu0 0
    %1379 = vmatpush1.bf16.msra.mxu0 0
    %1380 = vmatprep.subr.bf16.mxu0 0
    %1381 = vmatpush1.bf16.msra.mxu0 0
    %1382 = vmatprep.subr.bf16.mxu0 0
    %1383 = vmatpush1.bf16.msra.mxu0 0
    %1384 = vmatprep.subr.bf16.mxu0 0
    %1385 = vmatpush1.bf16.msra.mxu0 0
    %1386 = vmatprep.subr.bf16.mxu0 0
    %1387 = vmatpush1.bf16.msra.mxu0 0
    %1388 = vmatprep.subr.bf16.mxu0 0
    %1389 = vmatpush1.bf16.msra.mxu0 0
    %1390 = vmatprep.subr.bf16.mxu0 0
    %1391 = vmatpush1.bf16.msra.mxu0 0
    %1392 = vmatprep.subr.bf16.mxu0 0
    %1393 = vmatpush1.bf16.msra.mxu0 0
    %1394 = vmatprep.subr.bf16.mxu0 0
    %1395 = vmatpush1.bf16.msra.mxu0 0
    %1396 = vmatprep.subr.bf16.mxu0 0
    %1397 = vmatpush1.bf16.msra.mxu0 0
    %1398 = vmatprep.subr.bf16.mxu0 0
    %1399 = vmatpush1.bf16.msra.mxu0 0
    %1400 = vmatprep.subr.bf16.mxu0 0
    %1401 = vmatpush1.bf16.msra.mxu0 0
    %1402 = vmatprep.mubr.bf16.mxu0 0
    %1403 = vmatmul.mubr.bf16.gmra.mrb[0].mxu0 %v1368
    %v1404 = vpop.f32.mrb[0].mxu0
    %v1405 = vadd.f32 %v1340, %v1404
    %v1406 = vpop.f32.mrb[0].mxu0
    %v1407 = vpop.f32.mrb[0].mxu0
    %v1408 = vpop.f32.mrb[0].mxu0
    %1409 = vdwg.mxu0
    %vm1410 = vcmask 64512
    %1411 = vst.msk [vmem:[%s10] sm:$0xff] %vm1410, %v1405
    // Predicated region
    $region54: #{stress_cnn_forward.1} parent=1 // pred_check
      _
    $region55: #{stress_cnn_forward.1} parent=1 // pred_check_branch
      %1413 = sbr.rel (0) target = $region57
    $region56: #{stress_cnn_forward.1} parent=1 // pred_region
      _
    $region57: #{stress_cnn_forward.1} parent=1 // pred_fallthru
      _
    // Predicated region
    $region58: #{stress_cnn_forward.1} parent=1 // pred_check
      _
    $region59: #{stress_cnn_forward.1} parent=1 // pred_check_branch
      %1415 = sbr.rel (0) target = $region61
    $region60: #{stress_cnn_forward.1} parent=1 // pred_region
      _
    $region61: #{stress_cnn_forward.1} parent=1 // pred_fallthru
      _
    %1416 = vsyncpa [#allocation3], 1
    %1417 = vsyncpa [#allocation5], 1

</llo_original>
